<compile_context>
chip_gen: v7x
topology: tpu7x:2x2x1
jax: 0.10.0
libtpu: 0.0.40
codegen_flags: <defaults>
</compile_context>

<pallas_src>
import functools

import jax
import jax.numpy as jnp
import numpy as np
from jax import lax
from jax.experimental import pallas as pl
from jax.experimental.pallas import tpu as pltpu

KSIZE = 7
PAD = 3
_LANE = 128


def _pick_th(H, W):
    """Output h-rows per chunk so the matmul N dim (Th*W) is ~128 lanes."""
    if W >= _LANE:
        return 1
    th = _LANE // W
    if _LANE % W == 0 and H % th == 0:
        return th
    best = 1
    for cand in range(1, H + 1):
        if H % cand == 0 and cand * W <= _LANE:
            best = cand
    return best


def make_band_operator(weight, W, Th, dtype=jnp.bfloat16):
    """(cin, kd)-stacked, h-chunked banded conv operator.

    Shape (2*KSIZE, (Th+2*PAD)*W, Th*W): for each of the 14 (cin, kd) taps a
    band matrix applying the (kh, kw) part of the 7x7x7 kernel to a padded
    (Th+6)-row h-slab, producing Th output rows (Th*W lanes).  O(W^2) storage,
    so it stays VMEM-resident at production H, W.  Pure jnp (jit/trace safe).
    """
    w = weight.reshape(2, KSIZE, KSIZE, KSIZE).astype(jnp.float32)
    Tp = Th + 2 * PAD
    t = jnp.arange(Tp)[:, None, None, None]        # padded input row in slab
    wi = jnp.arange(W)[None, :, None, None]        # input w
    to = jnp.arange(Th)[None, None, :, None]       # output row within chunk
    wo = jnp.arange(W)[None, None, None, :]        # output w
    kh = t - to
    kw = wi - wo + PAD
    valid = (kh >= 0) & (kh < KSIZE) & (kw >= 0) & (kw < KSIZE)
    khc = jnp.clip(kh, 0, KSIZE - 1)
    kwc = jnp.clip(kw, 0, KSIZE - 1)
    tap = w[:, :, khc, kwc] * valid.astype(jnp.float32)   # (2,7,Tp,W,Th,W)
    return tap.reshape(2 * KSIZE, Tp * W, Th * W).astype(dtype)


def _spatial_attention_kernel(x_ref, r_ref, o_ref, *, Nb, C, D, H, W, Th,
                              operand_dtype):
    # x_ref : (Nb, C, D, H*W)   lane-dense activations (one batch block)
    # r_ref : (2*KSIZE, (Th+6)*W, Th*W)  VMEM-resident bf16 band operator
    # o_ref : (Nb, C, D, H*W)
    Hc = H // Th
    TN = Th * W                       # matmul N (128 lanes at the test size)
    KW = (Th + 2 * PAD) * W           # per-tap contraction width
    HWp = (H + 2 * PAD) * W

    inv_c = 1.0 / C
    hzero = jnp.zeros((D, PAD * W), operand_dtype)
    dzero = jnp.zeros((PAD, HWp), operand_dtype)

    # Channel mean (f32 accumulation, no full f32 copy of x) and channel max
    # (native dtype), then zero-pad depth (sublanes) and height (lanes).
    padded = []                                        # [b][cin] -> (D+6, HWp)
    for b in range(Nb):
        s = x_ref[b, 0].astype(jnp.float32)
        m = x_ref[b, 0]
        for c in range(1, C):
            xc = x_ref[b, c]                           # (D, H*W)
            s = s + xc.astype(jnp.float32)
            m = jnp.maximum(m, xc)
        per_c = []
        for plane in (s * inv_c, m):
            p = plane.astype(operand_dtype)
            p = jnp.concatenate([hzero, p, hzero], axis=1)   # (D, HWp)
            p = jnp.concatenate([dzero, p, dzero], axis=0)   # (D+6, HWp)
            per_c.append(p)
        padded.append(per_c)

    # 2*KSIZE accumulating MXU dots (one per (cin, kd) tap): LHS stacks batch,
    # h-chunk and depth rows (M = Nb*Hc*D); the band RHS (KW, TN) applies all
    # (kh, kw) taps inside the MXU with f32 accumulation.
    M = Nb * Hc * D
    acc = jnp.zeros((M, TN), jnp.float32)
    for c in range(2):
        for kd in range(KSIZE):
            rows = []
            for b in range(Nb):
                pp = padded[b][c]
                for j in range(Hc):
                    # lane offset j*TN is 128-aligned; depth halo is a static
                    # sublane slice of the small padded plane.
                    rows.append(pp[kd:kd + D, j * TN:j * TN + KW])
            lhs = rows[0] if len(rows) == 1 else jnp.concatenate(rows, axis=0)
            acc = acc + jnp.dot(lhs, r_ref[c * KSIZE + kd],
                                preferred_element_type=jnp.float32)

    # sigmoid via the EUP tanh identity; gate + store per (batch, h-chunk) with
    # 128-lane-aligned slices (unmasked, lane-dense stores).
    for b in range(Nb):
        for j in range(Hc):
            r0 = (b * Hc + j) * D
            gate = 0.5 * jnp.tanh(0.5 * acc[r0:r0 + D, :]) + 0.5   # (D, TN) f32
            xs = x_ref[b, :, :, j * TN:(j + 1) * TN]               # (C, D, TN)
            o_ref[b, :, :, j * TN:(j + 1) * TN] = (
                xs * gate[None].astype(xs.dtype)).astype(o_ref.dtype)


def spatial_attention(x, weight, *, operator=None,
                      operand_dtype=jnp.bfloat16, target_rows=256):
    N, C, D, H, W = x.shape
    HW = H * W
    Th = _pick_th(H, W)
    Hc = H // Th
    assert H % Th == 0

    # Batch block: stack batch elements into the matmul M dim until
    # M = Nb*Hc*D reaches ~target_rows; at production volumes Hc*D alone
    # exceeds it, so Nb stays 1 and the batch grid axis remains parallel.
    nb_want = max(1, -(-target_rows // (Hc * D)))
    Nb = 1
    for cand in range(min(N, nb_want), 0, -1):
        if N % cand == 0:
            Nb = cand
            break

    if operator is None:
        operator = make_band_operator(weight, W, Th, dtype=operand_dtype)
    operator = operator.astype(operand_dtype)
    assert operator.shape == (2 * KSIZE, (Th + 2 * PAD) * W, Th * W)

    x2 = x.reshape(N, C, D, HW)                       # lane-dense H*W last dim
    kernel = functools.partial(
        _spatial_attention_kernel, Nb=Nb, C=C, D=D, H=H, W=W, Th=Th,
        operand_dtype=operand_dtype)

    out = pl.pallas_call(
        kernel,
        out_shape=jax.ShapeDtypeStruct((N, C, D, HW), x.dtype),
        grid_spec=pltpu.PrefetchScalarGridSpec(
            num_scalar_prefetch=0,
            grid=(N // Nb,),
            in_specs=[
                pl.BlockSpec((Nb, C, D, HW), lambda n: (n, 0, 0, 0)),
                # Constant block index: the band operator stays VMEM-resident
                # across grid steps (never re-DMA'd).
                pl.BlockSpec(operator.shape, lambda n: (0, 0, 0)),
            ],
            out_specs=pl.BlockSpec((Nb, C, D, HW), lambda n: (n, 0, 0, 0)),
        ),
        compiler_params=pltpu.CompilerParams(
            dimension_semantics=("parallel",),
            vmem_limit_bytes=40 * 1024 * 1024),
    )(x2, operator)
    return out.reshape(N, C, D, H, W)


def _reference(x, weight):
    # Pure-JAX reference of the PyTorch forward: x * sigmoid(conv3d([mean,max])).
    avg = jnp.mean(x, axis=1, keepdims=True)
    mx = jnp.max(x, axis=1, keepdims=True)
    y = jnp.concatenate([avg, mx], axis=1)
    y = lax.conv_general_dilated(
        y, weight, window_strides=(1, 1, 1),
        padding=[(PAD, PAD)] * 3,
        dimension_numbers=("NCDHW", "OIDHW", "NCDHW"))
    return x * jax.nn.sigmoid(y)


if __name__ == "__main__":
    key = jax.random.PRNGKey(0)
    kx, kw = jax.random.split(key)

    N, C, D, H, W = 2, 4, 8, 16, 16
    x = jax.random.normal(kx, (N, C, D, H, W), jnp.float32)

    # Deterministic Conv3d(2, 1, k=7, bias=False) weight (kaiming-uniform-like).
    fan_in = 2 * KSIZE ** 3
    bound = 1.0 / float(np.sqrt(fan_in))
    weight = jax.random.uniform(kw, (1, 2, KSIZE, KSIZE, KSIZE), jnp.float32,
                                minval=-bound, maxval=bound)

    # jit with a traced weight: the operator is built in jnp inside the trace.
    sa = jax.jit(spatial_attention)
    out = jax.block_until_ready(sa(x, weight))

    ref = _reference(x, weight)
    # bf16 MXU operands (per perf review) -> tolerance relaxed vs f32 reference.
    np.testing.assert_allclose(np.asarray(out), np.asarray(ref),
                               atol=2e-2, rtol=2e-2)
    print("KERNEL_OK")
</pallas_src>

<mosaic_0001>
module attributes {stable_mosaic.version = 11 : i64} {
  func.func @_spatial_attention_kernel(%arg0: i32, %arg1: memref<2x4x8x256xf32, #tpu.memory_space<vmem>>, %arg2: memref<14x224x128xbf16, #tpu.memory_space<vmem>>, %arg3: memref<2x4x8x256xf32, #tpu.memory_space<vmem>>) attributes {dimension_semantics = [#tpu.dimension_semantics<parallel>], iteration_bounds = array<i64: 1>, scalar_prefetch = 0 : i64, scratch_operands = 0 : i64, tpu.core_type = #tpu.core_type<tc>, window_params = [{transform_indices = @transform_0, window_bounds = array<i64: 2, 4, 8, 256>}, {pipeline_mode = #tpu.pipeline_mode<synchronous>, transform_indices = @transform_1, window_bounds = array<i64: 14, 224, 128>}, {transform_indices = @transform_2, window_bounds = array<i64: 2, 4, 8, 256>}]} {
    %cst = arith.constant 0.000000e+00 : bf16
    %0 = vector.broadcast %cst : bf16 to vector<8x48xbf16>
    %cst_0 = arith.constant 0.000000e+00 : bf16
    %1 = vector.broadcast %cst_0 : bf16 to vector<3x352xbf16>
    %c0 = arith.constant 0 : index
    %c0_1 = arith.constant 0 : index
    %c0_2 = arith.constant 0 : index
    %c0_3 = arith.constant 0 : index
    %2 = vector.load %arg1[%c0, %c0_1, %c0_2, %c0_3] : memref<2x4x8x256xf32, #tpu.memory_space<vmem>>, vector<1x1x8x256xf32>
    %3 = vector.shape_cast %2 : vector<1x1x8x256xf32> to vector<8x256xf32>
    %c0_4 = arith.constant 0 : index
    %c0_5 = arith.constant 0 : index
    %c0_6 = arith.constant 0 : index
    %c0_7 = arith.constant 0 : index
    %4 = vector.load %arg1[%c0_4, %c0_5, %c0_6, %c0_7] : memref<2x4x8x256xf32, #tpu.memory_space<vmem>>, vector<1x1x8x256xf32>
    %5 = vector.shape_cast %4 : vector<1x1x8x256xf32> to vector<8x256xf32>
    %c0_8 = arith.constant 0 : index
    %c1 = arith.constant 1 : index
    %c0_9 = arith.constant 0 : index
    %c0_10 = arith.constant 0 : index
    %6 = vector.load %arg1[%c0_8, %c1, %c0_9, %c0_10] : memref<2x4x8x256xf32, #tpu.memory_space<vmem>>, vector<1x1x8x256xf32>
    %7 = vector.shape_cast %6 : vector<1x1x8x256xf32> to vector<8x256xf32>
    %8 = arith.addf %3, %7 : vector<8x256xf32>
    %9 = arith.maximumf %5, %7 : vector<8x256xf32>
    %c0_11 = arith.constant 0 : index
    %c2 = arith.constant 2 : index
    %c0_12 = arith.constant 0 : index
    %c0_13 = arith.constant 0 : index
    %10 = vector.load %arg1[%c0_11, %c2, %c0_12, %c0_13] : memref<2x4x8x256xf32, #tpu.memory_space<vmem>>, vector<1x1x8x256xf32>
    %11 = vector.shape_cast %10 : vector<1x1x8x256xf32> to vector<8x256xf32>
    %12 = arith.addf %8, %11 : vector<8x256xf32>
    %13 = arith.maximumf %9, %11 : vector<8x256xf32>
    %c0_14 = arith.constant 0 : index
    %c3 = arith.constant 3 : index
    %c0_15 = arith.constant 0 : index
    %c0_16 = arith.constant 0 : index
    %14 = vector.load %arg1[%c0_14, %c3, %c0_15, %c0_16] : memref<2x4x8x256xf32, #tpu.memory_space<vmem>>, vector<1x1x8x256xf32>
    %15 = vector.shape_cast %14 : vector<1x1x8x256xf32> to vector<8x256xf32>
    %16 = arith.addf %12, %15 : vector<8x256xf32>
    %17 = arith.maximumf %13, %15 : vector<8x256xf32>
    %cst_17 = arith.constant 2.500000e-01 : f32
    %18 = vector.broadcast %cst_17 : f32 to vector<8x256xf32>
    %19 = arith.mulf %16, %18 : vector<8x256xf32>
    %20 = arith.truncf %19 : vector<8x256xf32> to vector<8x256xbf16>
    %21 = tpu.concatenate %0, %20, %0 in 1 : vector<8x48xbf16>, vector<8x256xbf16>, vector<8x48xbf16> -> vector<8x352xbf16>
    %22 = tpu.concatenate %1, %21, %1 in 0 : vector<3x352xbf16>, vector<8x352xbf16>, vector<3x352xbf16> -> vector<14x352xbf16>
    %23 = arith.truncf %17 : vector<8x256xf32> to vector<8x256xbf16>
    %24 = tpu.concatenate %0, %23, %0 in 1 : vector<8x48xbf16>, vector<8x256xbf16>, vector<8x48xbf16> -> vector<8x352xbf16>
    %25 = tpu.concatenate %1, %24, %1 in 0 : vector<3x352xbf16>, vector<8x352xbf16>, vector<3x352xbf16> -> vector<14x352xbf16>
    %c1_18 = arith.constant 1 : index
    %c0_19 = arith.constant 0 : index
    %c0_20 = arith.constant 0 : index
    %c0_21 = arith.constant 0 : index
    %26 = vector.load %arg1[%c1_18, %c0_19, %c0_20, %c0_21] : memref<2x4x8x256xf32, #tpu.memory_space<vmem>>, vector<1x1x8x256xf32>
    %27 = vector.shape_cast %26 : vector<1x1x8x256xf32> to vector<8x256xf32>
    %c1_22 = arith.constant 1 : index
    %c0_23 = arith.constant 0 : index
    %c0_24 = arith.constant 0 : index
    %c0_25 = arith.constant 0 : index
    %28 = vector.load %arg1[%c1_22, %c0_23, %c0_24, %c0_25] : memref<2x4x8x256xf32, #tpu.memory_space<vmem>>, vector<1x1x8x256xf32>
    %29 = vector.shape_cast %28 : vector<1x1x8x256xf32> to vector<8x256xf32>
    %c1_26 = arith.constant 1 : index
    %c1_27 = arith.constant 1 : index
    %c0_28 = arith.constant 0 : index
    %c0_29 = arith.constant 0 : index
    %30 = vector.load %arg1[%c1_26, %c1_27, %c0_28, %c0_29] : memref<2x4x8x256xf32, #tpu.memory_space<vmem>>, vector<1x1x8x256xf32>
    %31 = vector.shape_cast %30 : vector<1x1x8x256xf32> to vector<8x256xf32>
    %32 = arith.addf %27, %31 : vector<8x256xf32>
    %33 = arith.maximumf %29, %31 : vector<8x256xf32>
    %c1_30 = arith.constant 1 : index
    %c2_31 = arith.constant 2 : index
    %c0_32 = arith.constant 0 : index
    %c0_33 = arith.constant 0 : index
    %34 = vector.load %arg1[%c1_30, %c2_31, %c0_32, %c0_33] : memref<2x4x8x256xf32, #tpu.memory_space<vmem>>, vector<1x1x8x256xf32>
    %35 = vector.shape_cast %34 : vector<1x1x8x256xf32> to vector<8x256xf32>
    %36 = arith.addf %32, %35 : vector<8x256xf32>
    %37 = arith.maximumf %33, %35 : vector<8x256xf32>
    %c1_34 = arith.constant 1 : index
    %c3_35 = arith.constant 3 : index
    %c0_36 = arith.constant 0 : index
    %c0_37 = arith.constant 0 : index
    %38 = vector.load %arg1[%c1_34, %c3_35, %c0_36, %c0_37] : memref<2x4x8x256xf32, #tpu.memory_space<vmem>>, vector<1x1x8x256xf32>
    %39 = vector.shape_cast %38 : vector<1x1x8x256xf32> to vector<8x256xf32>
    %40 = arith.addf %36, %39 : vector<8x256xf32>
    %41 = arith.maximumf %37, %39 : vector<8x256xf32>
    %cst_38 = arith.constant 2.500000e-01 : f32
    %42 = vector.broadcast %cst_38 : f32 to vector<8x256xf32>
    %43 = arith.mulf %40, %42 : vector<8x256xf32>
    %44 = arith.truncf %43 : vector<8x256xf32> to vector<8x256xbf16>
    %45 = tpu.concatenate %0, %44, %0 in 1 : vector<8x48xbf16>, vector<8x256xbf16>, vector<8x48xbf16> -> vector<8x352xbf16>
    %46 = tpu.concatenate %1, %45, %1 in 0 : vector<3x352xbf16>, vector<8x352xbf16>, vector<3x352xbf16> -> vector<14x352xbf16>
    %47 = arith.truncf %41 : vector<8x256xf32> to vector<8x256xbf16>
    %48 = tpu.concatenate %0, %47, %0 in 1 : vector<8x48xbf16>, vector<8x256xbf16>, vector<8x48xbf16> -> vector<8x352xbf16>
    %49 = tpu.concatenate %1, %48, %1 in 0 : vector<3x352xbf16>, vector<8x352xbf16>, vector<3x352xbf16> -> vector<14x352xbf16>
    %cst_39 = arith.constant 0.000000e+00 : f32
    %50 = vector.broadcast %cst_39 : f32 to vector<32x128xf32>
    %51 = vector.extract_strided_slice %22 {offsets = [0, 0], sizes = [8, 224], strides = [1, 1]} : vector<14x352xbf16> to vector<8x224xbf16>
    %52 = vector.extract_strided_slice %22 {offsets = [0, 128], sizes = [8, 224], strides = [1, 1]} : vector<14x352xbf16> to vector<8x224xbf16>
    %53 = vector.extract_strided_slice %46 {offsets = [0, 0], sizes = [8, 224], strides = [1, 1]} : vector<14x352xbf16> to vector<8x224xbf16>
    %54 = vector.extract_strided_slice %46 {offsets = [0, 128], sizes = [8, 224], strides = [1, 1]} : vector<14x352xbf16> to vector<8x224xbf16>
    %55 = tpu.concatenate %51, %52, %53, %54 in 0 : vector<8x224xbf16>, vector<8x224xbf16>, vector<8x224xbf16>, vector<8x224xbf16> -> vector<32x224xbf16>
    %c0_40 = arith.constant 0 : index
    %c0_41 = arith.constant 0 : index
    %c0_42 = arith.constant 0 : index
    %56 = vector.load %arg2[%c0_40, %c0_41, %c0_42] : memref<14x224x128xbf16, #tpu.memory_space<vmem>>, vector<1x224x128xbf16>
    %57 = vector.shape_cast %56 : vector<1x224x128xbf16> to vector<224x128xbf16>
    %cst_43 = arith.constant dense<0.000000e+00> : vector<32x128xf32>
    %58 = tpu.matmul %55, %57, %cst_43 {dimension_numbers = #tpu.dot_dimension_numbers<[1], [0], [0], [1], [0, 0, 1, 1], [], []>} : vector<32x224xbf16>, vector<224x128xbf16>, vector<32x128xf32> -> vector<32x128xf32>
    %59 = arith.addf %50, %58 : vector<32x128xf32>
    %60 = vector.extract_strided_slice %22 {offsets = [1, 0], sizes = [8, 224], strides = [1, 1]} : vector<14x352xbf16> to vector<8x224xbf16>
    %61 = vector.extract_strided_slice %22 {offsets = [1, 128], sizes = [8, 224], strides = [1, 1]} : vector<14x352xbf16> to vector<8x224xbf16>
    %62 = vector.extract_strided_slice %46 {offsets = [1, 0], sizes = [8, 224], strides = [1, 1]} : vector<14x352xbf16> to vector<8x224xbf16>
    %63 = vector.extract_strided_slice %46 {offsets = [1, 128], sizes = [8, 224], strides = [1, 1]} : vector<14x352xbf16> to vector<8x224xbf16>
    %64 = tpu.concatenate %60, %61, %62, %63 in 0 : vector<8x224xbf16>, vector<8x224xbf16>, vector<8x224xbf16>, vector<8x224xbf16> -> vector<32x224xbf16>
    %c1_44 = arith.constant 1 : index
    %c0_45 = arith.constant 0 : index
    %c0_46 = arith.constant 0 : index
    %65 = vector.load %arg2[%c1_44, %c0_45, %c0_46] : memref<14x224x128xbf16, #tpu.memory_space<vmem>>, vector<1x224x128xbf16>
    %66 = vector.shape_cast %65 : vector<1x224x128xbf16> to vector<224x128xbf16>
    %cst_47 = arith.constant dense<0.000000e+00> : vector<32x128xf32>
    %67 = tpu.matmul %64, %66, %cst_47 {dimension_numbers = #tpu.dot_dimension_numbers<[1], [0], [0], [1], [0, 0, 1, 1], [], []>} : vector<32x224xbf16>, vector<224x128xbf16>, vector<32x128xf32> -> vector<32x128xf32>
    %68 = arith.addf %59, %67 : vector<32x128xf32>
    %69 = vector.extract_strided_slice %22 {offsets = [2, 0], sizes = [8, 224], strides = [1, 1]} : vector<14x352xbf16> to vector<8x224xbf16>
    %70 = vector.extract_strided_slice %22 {offsets = [2, 128], sizes = [8, 224], strides = [1, 1]} : vector<14x352xbf16> to vector<8x224xbf16>
    %71 = vector.extract_strided_slice %46 {offsets = [2, 0], sizes = [8, 224], strides = [1, 1]} : vector<14x352xbf16> to vector<8x224xbf16>
    %72 = vector.extract_strided_slice %46 {offsets = [2, 128], sizes = [8, 224], strides = [1, 1]} : vector<14x352xbf16> to vector<8x224xbf16>
    %73 = tpu.concatenate %69, %70, %71, %72 in 0 : vector<8x224xbf16>, vector<8x224xbf16>, vector<8x224xbf16>, vector<8x224xbf16> -> vector<32x224xbf16>
    %c2_48 = arith.constant 2 : index
    %c0_49 = arith.constant 0 : index
    %c0_50 = arith.constant 0 : index
    %74 = vector.load %arg2[%c2_48, %c0_49, %c0_50] : memref<14x224x128xbf16, #tpu.memory_space<vmem>>, vector<1x224x128xbf16>
    %75 = vector.shape_cast %74 : vector<1x224x128xbf16> to vector<224x128xbf16>
    %cst_51 = arith.constant dense<0.000000e+00> : vector<32x128xf32>
    %76 = tpu.matmul %73, %75, %cst_51 {dimension_numbers = #tpu.dot_dimension_numbers<[1], [0], [0], [1], [0, 0, 1, 1], [], []>} : vector<32x224xbf16>, vector<224x128xbf16>, vector<32x128xf32> -> vector<32x128xf32>
    %77 = arith.addf %68, %76 : vector<32x128xf32>
    %78 = vector.extract_strided_slice %22 {offsets = [3, 0], sizes = [8, 224], strides = [1, 1]} : vector<14x352xbf16> to vector<8x224xbf16>
    %79 = vector.extract_strided_slice %22 {offsets = [3, 128], sizes = [8, 224], strides = [1, 1]} : vector<14x352xbf16> to vector<8x224xbf16>
    %80 = vector.extract_strided_slice %46 {offsets = [3, 0], sizes = [8, 224], strides = [1, 1]} : vector<14x352xbf16> to vector<8x224xbf16>
    %81 = vector.extract_strided_slice %46 {offsets = [3, 128], sizes = [8, 224], strides = [1, 1]} : vector<14x352xbf16> to vector<8x224xbf16>
    %82 = tpu.concatenate %78, %79, %80, %81 in 0 : vector<8x224xbf16>, vector<8x224xbf16>, vector<8x224xbf16>, vector<8x224xbf16> -> vector<32x224xbf16>
    %c3_52 = arith.constant 3 : index
    %c0_53 = arith.constant 0 : index
    %c0_54 = arith.constant 0 : index
    %83 = vector.load %arg2[%c3_52, %c0_53, %c0_54] : memref<14x224x128xbf16, #tpu.memory_space<vmem>>, vector<1x224x128xbf16>
    %84 = vector.shape_cast %83 : vector<1x224x128xbf16> to vector<224x128xbf16>
    %cst_55 = arith.constant dense<0.000000e+00> : vector<32x128xf32>
    %85 = tpu.matmul %82, %84, %cst_55 {dimension_numbers = #tpu.dot_dimension_numbers<[1], [0], [0], [1], [0, 0, 1, 1], [], []>} : vector<32x224xbf16>, vector<224x128xbf16>, vector<32x128xf32> -> vector<32x128xf32>
    %86 = arith.addf %77, %85 : vector<32x128xf32>
    %87 = vector.extract_strided_slice %22 {offsets = [4, 0], sizes = [8, 224], strides = [1, 1]} : vector<14x352xbf16> to vector<8x224xbf16>
    %88 = vector.extract_strided_slice %22 {offsets = [4, 128], sizes = [8, 224], strides = [1, 1]} : vector<14x352xbf16> to vector<8x224xbf16>
    %89 = vector.extract_strided_slice %46 {offsets = [4, 0], sizes = [8, 224], strides = [1, 1]} : vector<14x352xbf16> to vector<8x224xbf16>
    %90 = vector.extract_strided_slice %46 {offsets = [4, 128], sizes = [8, 224], strides = [1, 1]} : vector<14x352xbf16> to vector<8x224xbf16>
    %91 = tpu.concatenate %87, %88, %89, %90 in 0 : vector<8x224xbf16>, vector<8x224xbf16>, vector<8x224xbf16>, vector<8x224xbf16> -> vector<32x224xbf16>
    %c4 = arith.constant 4 : index
    %c0_56 = arith.constant 0 : index
    %c0_57 = arith.constant 0 : index
    %92 = vector.load %arg2[%c4, %c0_56, %c0_57] : memref<14x224x128xbf16, #tpu.memory_space<vmem>>, vector<1x224x128xbf16>
    %93 = vector.shape_cast %92 : vector<1x224x128xbf16> to vector<224x128xbf16>
    %cst_58 = arith.constant dense<0.000000e+00> : vector<32x128xf32>
    %94 = tpu.matmul %91, %93, %cst_58 {dimension_numbers = #tpu.dot_dimension_numbers<[1], [0], [0], [1], [0, 0, 1, 1], [], []>} : vector<32x224xbf16>, vector<224x128xbf16>, vector<32x128xf32> -> vector<32x128xf32>
    %95 = arith.addf %86, %94 : vector<32x128xf32>
    %96 = vector.extract_strided_slice %22 {offsets = [5, 0], sizes = [8, 224], strides = [1, 1]} : vector<14x352xbf16> to vector<8x224xbf16>
    %97 = vector.extract_strided_slice %22 {offsets = [5, 128], sizes = [8, 224], strides = [1, 1]} : vector<14x352xbf16> to vector<8x224xbf16>
    %98 = vector.extract_strided_slice %46 {offsets = [5, 0], sizes = [8, 224], strides = [1, 1]} : vector<14x352xbf16> to vector<8x224xbf16>
    %99 = vector.extract_strided_slice %46 {offsets = [5, 128], sizes = [8, 224], strides = [1, 1]} : vector<14x352xbf16> to vector<8x224xbf16>
    %100 = tpu.concatenate %96, %97, %98, %99 in 0 : vector<8x224xbf16>, vector<8x224xbf16>, vector<8x224xbf16>, vector<8x224xbf16> -> vector<32x224xbf16>
    %c5 = arith.constant 5 : index
    %c0_59 = arith.constant 0 : index
    %c0_60 = arith.constant 0 : index
    %101 = vector.load %arg2[%c5, %c0_59, %c0_60] : memref<14x224x128xbf16, #tpu.memory_space<vmem>>, vector<1x224x128xbf16>
    %102 = vector.shape_cast %101 : vector<1x224x128xbf16> to vector<224x128xbf16>
    %cst_61 = arith.constant dense<0.000000e+00> : vector<32x128xf32>
    %103 = tpu.matmul %100, %102, %cst_61 {dimension_numbers = #tpu.dot_dimension_numbers<[1], [0], [0], [1], [0, 0, 1, 1], [], []>} : vector<32x224xbf16>, vector<224x128xbf16>, vector<32x128xf32> -> vector<32x128xf32>
    %104 = arith.addf %95, %103 : vector<32x128xf32>
    %105 = vector.extract_strided_slice %22 {offsets = [6, 0], sizes = [8, 224], strides = [1, 1]} : vector<14x352xbf16> to vector<8x224xbf16>
    %106 = vector.extract_strided_slice %22 {offsets = [6, 128], sizes = [8, 224], strides = [1, 1]} : vector<14x352xbf16> to vector<8x224xbf16>
    %107 = vector.extract_strided_slice %46 {offsets = [6, 0], sizes = [8, 224], strides = [1, 1]} : vector<14x352xbf16> to vector<8x224xbf16>
    %108 = vector.extract_strided_slice %46 {offsets = [6, 128], sizes = [8, 224], strides = [1, 1]} : vector<14x352xbf16> to vector<8x224xbf16>
    %109 = tpu.concatenate %105, %106, %107, %108 in 0 : vector<8x224xbf16>, vector<8x224xbf16>, vector<8x224xbf16>, vector<8x224xbf16> -> vector<32x224xbf16>
    %c6 = arith.constant 6 : index
    %c0_62 = arith.constant 0 : index
    %c0_63 = arith.constant 0 : index
    %110 = vector.load %arg2[%c6, %c0_62, %c0_63] : memref<14x224x128xbf16, #tpu.memory_space<vmem>>, vector<1x224x128xbf16>
    %111 = vector.shape_cast %110 : vector<1x224x128xbf16> to vector<224x128xbf16>
    %cst_64 = arith.constant dense<0.000000e+00> : vector<32x128xf32>
    %112 = tpu.matmul %109, %111, %cst_64 {dimension_numbers = #tpu.dot_dimension_numbers<[1], [0], [0], [1], [0, 0, 1, 1], [], []>} : vector<32x224xbf16>, vector<224x128xbf16>, vector<32x128xf32> -> vector<32x128xf32>
    %113 = arith.addf %104, %112 : vector<32x128xf32>
    %114 = vector.extract_strided_slice %25 {offsets = [0, 0], sizes = [8, 224], strides = [1, 1]} : vector<14x352xbf16> to vector<8x224xbf16>
    %115 = vector.extract_strided_slice %25 {offsets = [0, 128], sizes = [8, 224], strides = [1, 1]} : vector<14x352xbf16> to vector<8x224xbf16>
    %116 = vector.extract_strided_slice %49 {offsets = [0, 0], sizes = [8, 224], strides = [1, 1]} : vector<14x352xbf16> to vector<8x224xbf16>
    %117 = vector.extract_strided_slice %49 {offsets = [0, 128], sizes = [8, 224], strides = [1, 1]} : vector<14x352xbf16> to vector<8x224xbf16>
    %118 = tpu.concatenate %114, %115, %116, %117 in 0 : vector<8x224xbf16>, vector<8x224xbf16>, vector<8x224xbf16>, vector<8x224xbf16> -> vector<32x224xbf16>
    %c7 = arith.constant 7 : index
    %c0_65 = arith.constant 0 : index
    %c0_66 = arith.constant 0 : index
    %119 = vector.load %arg2[%c7, %c0_65, %c0_66] : memref<14x224x128xbf16, #tpu.memory_space<vmem>>, vector<1x224x128xbf16>
    %120 = vector.shape_cast %119 : vector<1x224x128xbf16> to vector<224x128xbf16>
    %cst_67 = arith.constant dense<0.000000e+00> : vector<32x128xf32>
    %121 = tpu.matmul %118, %120, %cst_67 {dimension_numbers = #tpu.dot_dimension_numbers<[1], [0], [0], [1], [0, 0, 1, 1], [], []>} : vector<32x224xbf16>, vector<224x128xbf16>, vector<32x128xf32> -> vector<32x128xf32>
    %122 = arith.addf %113, %121 : vector<32x128xf32>
    %123 = vector.extract_strided_slice %25 {offsets = [1, 0], sizes = [8, 224], strides = [1, 1]} : vector<14x352xbf16> to vector<8x224xbf16>
    %124 = vector.extract_strided_slice %25 {offsets = [1, 128], sizes = [8, 224], strides = [1, 1]} : vector<14x352xbf16> to vector<8x224xbf16>
    %125 = vector.extract_strided_slice %49 {offsets = [1, 0], sizes = [8, 224], strides = [1, 1]} : vector<14x352xbf16> to vector<8x224xbf16>
    %126 = vector.extract_strided_slice %49 {offsets = [1, 128], sizes = [8, 224], strides = [1, 1]} : vector<14x352xbf16> to vector<8x224xbf16>
    %127 = tpu.concatenate %123, %124, %125, %126 in 0 : vector<8x224xbf16>, vector<8x224xbf16>, vector<8x224xbf16>, vector<8x224xbf16> -> vector<32x224xbf16>
    %c8 = arith.constant 8 : index
    %c0_68 = arith.constant 0 : index
    %c0_69 = arith.constant 0 : index
    %128 = vector.load %arg2[%c8, %c0_68, %c0_69] : memref<14x224x128xbf16, #tpu.memory_space<vmem>>, vector<1x224x128xbf16>
    %129 = vector.shape_cast %128 : vector<1x224x128xbf16> to vector<224x128xbf16>
    %cst_70 = arith.constant dense<0.000000e+00> : vector<32x128xf32>
    %130 = tpu.matmul %127, %129, %cst_70 {dimension_numbers = #tpu.dot_dimension_numbers<[1], [0], [0], [1], [0, 0, 1, 1], [], []>} : vector<32x224xbf16>, vector<224x128xbf16>, vector<32x128xf32> -> vector<32x128xf32>
    %131 = arith.addf %122, %130 : vector<32x128xf32>
    %132 = vector.extract_strided_slice %25 {offsets = [2, 0], sizes = [8, 224], strides = [1, 1]} : vector<14x352xbf16> to vector<8x224xbf16>
    %133 = vector.extract_strided_slice %25 {offsets = [2, 128], sizes = [8, 224], strides = [1, 1]} : vector<14x352xbf16> to vector<8x224xbf16>
    %134 = vector.extract_strided_slice %49 {offsets = [2, 0], sizes = [8, 224], strides = [1, 1]} : vector<14x352xbf16> to vector<8x224xbf16>
    %135 = vector.extract_strided_slice %49 {offsets = [2, 128], sizes = [8, 224], strides = [1, 1]} : vector<14x352xbf16> to vector<8x224xbf16>
    %136 = tpu.concatenate %132, %133, %134, %135 in 0 : vector<8x224xbf16>, vector<8x224xbf16>, vector<8x224xbf16>, vector<8x224xbf16> -> vector<32x224xbf16>
    %c9 = arith.constant 9 : index
    %c0_71 = arith.constant 0 : index
    %c0_72 = arith.constant 0 : index
    %137 = vector.load %arg2[%c9, %c0_71, %c0_72] : memref<14x224x128xbf16, #tpu.memory_space<vmem>>, vector<1x224x128xbf16>
    %138 = vector.shape_cast %137 : vector<1x224x128xbf16> to vector<224x128xbf16>
    %cst_73 = arith.constant dense<0.000000e+00> : vector<32x128xf32>
    %139 = tpu.matmul %136, %138, %cst_73 {dimension_numbers = #tpu.dot_dimension_numbers<[1], [0], [0], [1], [0, 0, 1, 1], [], []>} : vector<32x224xbf16>, vector<224x128xbf16>, vector<32x128xf32> -> vector<32x128xf32>
    %140 = arith.addf %131, %139 : vector<32x128xf32>
    %141 = vector.extract_strided_slice %25 {offsets = [3, 0], sizes = [8, 224], strides = [1, 1]} : vector<14x352xbf16> to vector<8x224xbf16>
    %142 = vector.extract_strided_slice %25 {offsets = [3, 128], sizes = [8, 224], strides = [1, 1]} : vector<14x352xbf16> to vector<8x224xbf16>
    %143 = vector.extract_strided_slice %49 {offsets = [3, 0], sizes = [8, 224], strides = [1, 1]} : vector<14x352xbf16> to vector<8x224xbf16>
    %144 = vector.extract_strided_slice %49 {offsets = [3, 128], sizes = [8, 224], strides = [1, 1]} : vector<14x352xbf16> to vector<8x224xbf16>
    %145 = tpu.concatenate %141, %142, %143, %144 in 0 : vector<8x224xbf16>, vector<8x224xbf16>, vector<8x224xbf16>, vector<8x224xbf16> -> vector<32x224xbf16>
    %c10 = arith.constant 10 : index
    %c0_74 = arith.constant 0 : index
    %c0_75 = arith.constant 0 : index
    %146 = vector.load %arg2[%c10, %c0_74, %c0_75] : memref<14x224x128xbf16, #tpu.memory_space<vmem>>, vector<1x224x128xbf16>
    %147 = vector.shape_cast %146 : vector<1x224x128xbf16> to vector<224x128xbf16>
    %cst_76 = arith.constant dense<0.000000e+00> : vector<32x128xf32>
    %148 = tpu.matmul %145, %147, %cst_76 {dimension_numbers = #tpu.dot_dimension_numbers<[1], [0], [0], [1], [0, 0, 1, 1], [], []>} : vector<32x224xbf16>, vector<224x128xbf16>, vector<32x128xf32> -> vector<32x128xf32>
    %149 = arith.addf %140, %148 : vector<32x128xf32>
    %150 = vector.extract_strided_slice %25 {offsets = [4, 0], sizes = [8, 224], strides = [1, 1]} : vector<14x352xbf16> to vector<8x224xbf16>
    %151 = vector.extract_strided_slice %25 {offsets = [4, 128], sizes = [8, 224], strides = [1, 1]} : vector<14x352xbf16> to vector<8x224xbf16>
    %152 = vector.extract_strided_slice %49 {offsets = [4, 0], sizes = [8, 224], strides = [1, 1]} : vector<14x352xbf16> to vector<8x224xbf16>
    %153 = vector.extract_strided_slice %49 {offsets = [4, 128], sizes = [8, 224], strides = [1, 1]} : vector<14x352xbf16> to vector<8x224xbf16>
    %154 = tpu.concatenate %150, %151, %152, %153 in 0 : vector<8x224xbf16>, vector<8x224xbf16>, vector<8x224xbf16>, vector<8x224xbf16> -> vector<32x224xbf16>
    %c11 = arith.constant 11 : index
    %c0_77 = arith.constant 0 : index
    %c0_78 = arith.constant 0 : index
    %155 = vector.load %arg2[%c11, %c0_77, %c0_78] : memref<14x224x128xbf16, #tpu.memory_space<vmem>>, vector<1x224x128xbf16>
    %156 = vector.shape_cast %155 : vector<1x224x128xbf16> to vector<224x128xbf16>
    %cst_79 = arith.constant dense<0.000000e+00> : vector<32x128xf32>
    %157 = tpu.matmul %154, %156, %cst_79 {dimension_numbers = #tpu.dot_dimension_numbers<[1], [0], [0], [1], [0, 0, 1, 1], [], []>} : vector<32x224xbf16>, vector<224x128xbf16>, vector<32x128xf32> -> vector<32x128xf32>
    %158 = arith.addf %149, %157 : vector<32x128xf32>
    %159 = vector.extract_strided_slice %25 {offsets = [5, 0], sizes = [8, 224], strides = [1, 1]} : vector<14x352xbf16> to vector<8x224xbf16>
    %160 = vector.extract_strided_slice %25 {offsets = [5, 128], sizes = [8, 224], strides = [1, 1]} : vector<14x352xbf16> to vector<8x224xbf16>
    %161 = vector.extract_strided_slice %49 {offsets = [5, 0], sizes = [8, 224], strides = [1, 1]} : vector<14x352xbf16> to vector<8x224xbf16>
    %162 = vector.extract_strided_slice %49 {offsets = [5, 128], sizes = [8, 224], strides = [1, 1]} : vector<14x352xbf16> to vector<8x224xbf16>
    %163 = tpu.concatenate %159, %160, %161, %162 in 0 : vector<8x224xbf16>, vector<8x224xbf16>, vector<8x224xbf16>, vector<8x224xbf16> -> vector<32x224xbf16>
    %c12 = arith.constant 12 : index
    %c0_80 = arith.constant 0 : index
    %c0_81 = arith.constant 0 : index
    %164 = vector.load %arg2[%c12, %c0_80, %c0_81] : memref<14x224x128xbf16, #tpu.memory_space<vmem>>, vector<1x224x128xbf16>
    %165 = vector.shape_cast %164 : vector<1x224x128xbf16> to vector<224x128xbf16>
    %cst_82 = arith.constant dense<0.000000e+00> : vector<32x128xf32>
    %166 = tpu.matmul %163, %165, %cst_82 {dimension_numbers = #tpu.dot_dimension_numbers<[1], [0], [0], [1], [0, 0, 1, 1], [], []>} : vector<32x224xbf16>, vector<224x128xbf16>, vector<32x128xf32> -> vector<32x128xf32>
    %167 = arith.addf %158, %166 : vector<32x128xf32>
    %168 = vector.extract_strided_slice %25 {offsets = [6, 0], sizes = [8, 224], strides = [1, 1]} : vector<14x352xbf16> to vector<8x224xbf16>
    %169 = vector.extract_strided_slice %25 {offsets = [6, 128], sizes = [8, 224], strides = [1, 1]} : vector<14x352xbf16> to vector<8x224xbf16>
    %170 = vector.extract_strided_slice %49 {offsets = [6, 0], sizes = [8, 224], strides = [1, 1]} : vector<14x352xbf16> to vector<8x224xbf16>
    %171 = vector.extract_strided_slice %49 {offsets = [6, 128], sizes = [8, 224], strides = [1, 1]} : vector<14x352xbf16> to vector<8x224xbf16>
    %172 = tpu.concatenate %168, %169, %170, %171 in 0 : vector<8x224xbf16>, vector<8x224xbf16>, vector<8x224xbf16>, vector<8x224xbf16> -> vector<32x224xbf16>
    %c13 = arith.constant 13 : index
    %c0_83 = arith.constant 0 : index
    %c0_84 = arith.constant 0 : index
    %173 = vector.load %arg2[%c13, %c0_83, %c0_84] : memref<14x224x128xbf16, #tpu.memory_space<vmem>>, vector<1x224x128xbf16>
    %174 = vector.shape_cast %173 : vector<1x224x128xbf16> to vector<224x128xbf16>
    %cst_85 = arith.constant dense<0.000000e+00> : vector<32x128xf32>
    %175 = tpu.matmul %172, %174, %cst_85 {dimension_numbers = #tpu.dot_dimension_numbers<[1], [0], [0], [1], [0, 0, 1, 1], [], []>} : vector<32x224xbf16>, vector<224x128xbf16>, vector<32x128xf32> -> vector<32x128xf32>
    %176 = arith.addf %167, %175 : vector<32x128xf32>
    %177 = vector.extract_strided_slice %176 {offsets = [0, 0], sizes = [8, 128], strides = [1, 1]} : vector<32x128xf32> to vector<8x128xf32>
    %cst_86 = arith.constant 5.000000e-01 : f32
    %178 = vector.broadcast %cst_86 : f32 to vector<8x128xf32>
    %179 = arith.mulf %178, %177 : vector<8x128xf32>
    %180 = math.tanh %179 : vector<8x128xf32>
    %cst_87 = arith.constant 5.000000e-01 : f32
    %181 = vector.broadcast %cst_87 : f32 to vector<8x128xf32>
    %182 = arith.mulf %181, %180 : vector<8x128xf32>
    %cst_88 = arith.constant 5.000000e-01 : f32
    %183 = vector.broadcast %cst_88 : f32 to vector<8x128xf32>
    %184 = arith.addf %182, %183 : vector<8x128xf32>
    %c0_89 = arith.constant 0 : index
    %c0_90 = arith.constant 0 : index
    %c0_91 = arith.constant 0 : index
    %c0_92 = arith.constant 0 : index
    %185 = vector.load %arg1[%c0_89, %c0_90, %c0_91, %c0_92] : memref<2x4x8x256xf32, #tpu.memory_space<vmem>>, vector<1x4x8x128xf32>
    %186 = vector.shape_cast %185 : vector<1x4x8x128xf32> to vector<4x8x128xf32>
    %187 = vector.shape_cast %184 : vector<8x128xf32> to vector<1x8x128xf32>
    %188 = vector.broadcast %187 : vector<1x8x128xf32> to vector<4x8x128xf32>
    %189 = arith.mulf %186, %188 : vector<4x8x128xf32>
    %c0_93 = arith.constant 0 : index
    %c0_94 = arith.constant 0 : index
    %c0_95 = arith.constant 0 : index
    %c0_96 = arith.constant 0 : index
    %190 = vector.load %arg3[%c0_93, %c0_94, %c0_95, %c0_96] : memref<2x4x8x256xf32, #tpu.memory_space<vmem>>, vector<1x4x8x128xf32>
    %191 = vector.shape_cast %190 : vector<1x4x8x128xf32> to vector<4x8x128xf32>
    %192 = vector.shape_cast %189 : vector<4x8x128xf32> to vector<1x4x8x128xf32>
    tpu.vector_store %arg3[%c0_93, %c0_94, %c0_95, %c0_96], %192 {strides = array<i32>} : memref<2x4x8x256xf32, #tpu.memory_space<vmem>>, vector<1x4x8x128xf32>,
    %193 = vector.extract_strided_slice %176 {offsets = [8, 0], sizes = [8, 128], strides = [1, 1]} : vector<32x128xf32> to vector<8x128xf32>
    %cst_97 = arith.constant 5.000000e-01 : f32
    %194 = vector.broadcast %cst_97 : f32 to vector<8x128xf32>
    %195 = arith.mulf %194, %193 : vector<8x128xf32>
    %196 = math.tanh %195 : vector<8x128xf32>
    %cst_98 = arith.constant 5.000000e-01 : f32
    %197 = vector.broadcast %cst_98 : f32 to vector<8x128xf32>
    %198 = arith.mulf %197, %196 : vector<8x128xf32>
    %cst_99 = arith.constant 5.000000e-01 : f32
    %199 = vector.broadcast %cst_99 : f32 to vector<8x128xf32>
    %200 = arith.addf %198, %199 : vector<8x128xf32>
    %c0_100 = arith.constant 0 : index
    %c0_101 = arith.constant 0 : index
    %c0_102 = arith.constant 0 : index
    %c128 = arith.constant 128 : index
    %201 = vector.load %arg1[%c0_100, %c0_101, %c0_102, %c128] : memref<2x4x8x256xf32, #tpu.memory_space<vmem>>, vector<1x4x8x128xf32>
    %202 = vector.shape_cast %201 : vector<1x4x8x128xf32> to vector<4x8x128xf32>
    %203 = vector.shape_cast %200 : vector<8x128xf32> to vector<1x8x128xf32>
    %204 = vector.broadcast %203 : vector<1x8x128xf32> to vector<4x8x128xf32>
    %205 = arith.mulf %202, %204 : vector<4x8x128xf32>
    %c0_103 = arith.constant 0 : index
    %c0_104 = arith.constant 0 : index
    %c0_105 = arith.constant 0 : index
    %c128_106 = arith.constant 128 : index
    %206 = vector.load %arg3[%c0_103, %c0_104, %c0_105, %c128_106] : memref<2x4x8x256xf32, #tpu.memory_space<vmem>>, vector<1x4x8x128xf32>
    %207 = vector.shape_cast %206 : vector<1x4x8x128xf32> to vector<4x8x128xf32>
    %208 = vector.shape_cast %205 : vector<4x8x128xf32> to vector<1x4x8x128xf32>
    tpu.vector_store %arg3[%c0_103, %c0_104, %c0_105, %c128_106], %208 {strides = array<i32>} : memref<2x4x8x256xf32, #tpu.memory_space<vmem>>, vector<1x4x8x128xf32>,
    %209 = vector.extract_strided_slice %176 {offsets = [16, 0], sizes = [8, 128], strides = [1, 1]} : vector<32x128xf32> to vector<8x128xf32>
    %cst_107 = arith.constant 5.000000e-01 : f32
    %210 = vector.broadcast %cst_107 : f32 to vector<8x128xf32>
    %211 = arith.mulf %210, %209 : vector<8x128xf32>
    %212 = math.tanh %211 : vector<8x128xf32>
    %cst_108 = arith.constant 5.000000e-01 : f32
    %213 = vector.broadcast %cst_108 : f32 to vector<8x128xf32>
    %214 = arith.mulf %213, %212 : vector<8x128xf32>
    %cst_109 = arith.constant 5.000000e-01 : f32
    %215 = vector.broadcast %cst_109 : f32 to vector<8x128xf32>
    %216 = arith.addf %214, %215 : vector<8x128xf32>
    %c1_110 = arith.constant 1 : index
    %c0_111 = arith.constant 0 : index
    %c0_112 = arith.constant 0 : index
    %c0_113 = arith.constant 0 : index
    %217 = vector.load %arg1[%c1_110, %c0_111, %c0_112, %c0_113] : memref<2x4x8x256xf32, #tpu.memory_space<vmem>>, vector<1x4x8x128xf32>
    %218 = vector.shape_cast %217 : vector<1x4x8x128xf32> to vector<4x8x128xf32>
    %219 = vector.shape_cast %216 : vector<8x128xf32> to vector<1x8x128xf32>
    %220 = vector.broadcast %219 : vector<1x8x128xf32> to vector<4x8x128xf32>
    %221 = arith.mulf %218, %220 : vector<4x8x128xf32>
    %c1_114 = arith.constant 1 : index
    %c0_115 = arith.constant 0 : index
    %c0_116 = arith.constant 0 : index
    %c0_117 = arith.constant 0 : index
    %222 = vector.load %arg3[%c1_114, %c0_115, %c0_116, %c0_117] : memref<2x4x8x256xf32, #tpu.memory_space<vmem>>, vector<1x4x8x128xf32>
    %223 = vector.shape_cast %222 : vector<1x4x8x128xf32> to vector<4x8x128xf32>
    %224 = vector.shape_cast %221 : vector<4x8x128xf32> to vector<1x4x8x128xf32>
    tpu.vector_store %arg3[%c1_114, %c0_115, %c0_116, %c0_117], %224 {strides = array<i32>} : memref<2x4x8x256xf32, #tpu.memory_space<vmem>>, vector<1x4x8x128xf32>,
    %225 = vector.extract_strided_slice %176 {offsets = [24, 0], sizes = [8, 128], strides = [1, 1]} : vector<32x128xf32> to vector<8x128xf32>
    %cst_118 = arith.constant 5.000000e-01 : f32
    %226 = vector.broadcast %cst_118 : f32 to vector<8x128xf32>
    %227 = arith.mulf %226, %225 : vector<8x128xf32>
    %228 = math.tanh %227 : vector<8x128xf32>
    %cst_119 = arith.constant 5.000000e-01 : f32
    %229 = vector.broadcast %cst_119 : f32 to vector<8x128xf32>
    %230 = arith.mulf %229, %228 : vector<8x128xf32>
    %cst_120 = arith.constant 5.000000e-01 : f32
    %231 = vector.broadcast %cst_120 : f32 to vector<8x128xf32>
    %232 = arith.addf %230, %231 : vector<8x128xf32>
    %c1_121 = arith.constant 1 : index
    %c0_122 = arith.constant 0 : index
    %c0_123 = arith.constant 0 : index
    %c128_124 = arith.constant 128 : index
    %233 = vector.load %arg1[%c1_121, %c0_122, %c0_123, %c128_124] : memref<2x4x8x256xf32, #tpu.memory_space<vmem>>, vector<1x4x8x128xf32>
    %234 = vector.shape_cast %233 : vector<1x4x8x128xf32> to vector<4x8x128xf32>
    %235 = vector.shape_cast %232 : vector<8x128xf32> to vector<1x8x128xf32>
    %236 = vector.broadcast %235 : vector<1x8x128xf32> to vector<4x8x128xf32>
    %237 = arith.mulf %234, %236 : vector<4x8x128xf32>
    %c1_125 = arith.constant 1 : index
    %c0_126 = arith.constant 0 : index
    %c0_127 = arith.constant 0 : index
    %c128_128 = arith.constant 128 : index
    %238 = vector.load %arg3[%c1_125, %c0_126, %c0_127, %c128_128] : memref<2x4x8x256xf32, #tpu.memory_space<vmem>>, vector<1x4x8x128xf32>
    %239 = vector.shape_cast %238 : vector<1x4x8x128xf32> to vector<4x8x128xf32>
    %240 = vector.shape_cast %237 : vector<4x8x128xf32> to vector<1x4x8x128xf32>
    tpu.vector_store %arg3[%c1_125, %c0_126, %c0_127, %c128_128], %240 {strides = array<i32>} : memref<2x4x8x256xf32, #tpu.memory_space<vmem>>, vector<1x4x8x128xf32>,
    return
  }
  func.func @transform_0(%arg0: i32) -> (i32, i32, i32, i32) {
    %c0_i32 = arith.constant 0 : i32
    %c0_i32_0 = arith.constant 0 : i32
    %c0_i32_1 = arith.constant 0 : i32
    %c0_i32_2 = arith.constant 0 : i32
    return %arg0, %c0_i32, %c0_i32_0, %c0_i32_1 : i32, i32, i32, i32
  }
  func.func @transform_1(%arg0: i32) -> (i32, i32, i32) {
    %c0_i32 = arith.constant 0 : i32
    %c0_i32_0 = arith.constant 0 : i32
    %c0_i32_1 = arith.constant 0 : i32
    %c0_i32_2 = arith.constant 0 : i32
    return %c0_i32, %c0_i32_0, %c0_i32_1 : i32, i32, i32
  }
  func.func @transform_2(%arg0: i32) -> (i32, i32, i32, i32) {
    %c0_i32 = arith.constant 0 : i32
    %c0_i32_0 = arith.constant 0 : i32
    %c0_i32_1 = arith.constant 0 : i32
    %c0_i32_2 = arith.constant 0 : i32
    return %arg0, %c0_i32, %c0_i32_0, %c0_i32_1 : i32, i32, i32, i32
  }
}

</mosaic_0001>

<llo_original>
// kernel: spatial_attention.1
$region0: #{spatial_attention.1}
  #allocation0 [shape = 'u32[]', space=smem, size = 0x4, offset = 0x4, fixed_abs, tag = 'smem constant byte address 0x4 - core index']
  #allocation1 [shape = 'u32[144,128]{1,0:T(1,128)}', space=vmem, size = 0x12000, scoped, tag = 'internal scratch']
  %s0 = inlined_call_operand.vmem [shape: f32[2,4,8,256], index: 0, kind: input, shape index: {}]
  %s1 = inlined_call_operand.vmem [shape: bf16[14,224,128], index: 1, kind: input, shape index: {}]
  %s2 = inlined_call_operand.vmem [shape: f32[2,4,8,256], index: 2, kind: output, shape index: {}]
  %s3 = sld [smem:[#allocation0]]
  $region18: #{spatial_attention.1} parent=0
    _
  %s5 = ssub.s32 1, %s3
  %s6 = scalar_select 0, %s5, %s3
  // Predicated region
  $region2: #{spatial_attention.1} parent=0 // pred_check
    _
  $region3: #{spatial_attention.1} parent=0 // pred_check_branch
    %8 = sbr.rel (0) target = $region5
  $region4: #{spatial_attention.1} parent=0 // pred_region
    _
  $region5: #{spatial_attention.1} parent=0 // pred_fallthru
    _
  // Predicated region
  $region6: #{spatial_attention.1} parent=0 // pred_check
    _
  $region7: #{spatial_attention.1} parent=0 // pred_check_branch
    %10 = sbr.rel (0) target = $region9
  $region8: #{spatial_attention.1} parent=0 // pred_region
    _
  $region9: #{spatial_attention.1} parent=0 // pred_fallthru
    _
  %v12 = vld [vmem:[%s0] sm:$0xff]
  %v13 = vld [vmem:[%s0 + $0x8] sm:$0xff]
  %s14 = scalar_lea.vmem %s0, 16
  %v15 = vld [vmem:[%s14] sm:$0xff]
  %v16 = vld [vmem:[%s14 + $0x8] sm:$0xff]
  %v17 = vadd.f32 %v12, %v15
  %v18 = vadd.f32 %v13, %v16
  %v19 = vmax.f32 %v12, %v15
  %v20 = vmax.f32 %v13, %v16
  %s21 = scalar_lea.vmem %s0, 32
  %v22 = vld [vmem:[%s21] sm:$0xff]
  %v23 = vld [vmem:[%s21 + $0x8] sm:$0xff]
  %v24 = vadd.f32 %v17, %v22
  %v25 = vadd.f32 %v18, %v23
  %v26 = vmax.f32 %v19, %v22
  %v27 = vmax.f32 %v20, %v23
  %s28 = scalar_lea.vmem %s0, 48
  %v29 = vld [vmem:[%s28] sm:$0xff]
  %v30 = vld [vmem:[%s28 + $0x8] sm:$0xff]
  %v31 = vadd.f32 %v24, %v29
  %v32 = vadd.f32 %v25, %v30
  %v33 = vmax.f32 %v26, %v29
  %v34 = vmax.f32 %v27, %v30
  %v35 = vmul.f32 %v31, 0.25
  %v36 = vmul.f32 %v32, 0.25
  %v37 = vpack.c.bf16 %v35, %v35
  %v38 = vpack.c.bf16 %v36, %v36
  %41 = vrot.lane.b32.xlu0 %v37, 48
  %v42 = vpop.permute.xlu0 %41
  %43 = vrot.lane.b32.xlu0 %v38, 48
  %v44 = vpop.permute.xlu0 %43
  %vm45 = vcmask 392192
  %v46 = vsel %vm45, %v42, %v44
  %vm47 = vcmask 392192
  %v50 = vsel %vm47, 0, %v42
  %v52 = vsel %vm47, %v44, 0
  %v53 = vshrl.u32 %v50, 16
  %v55 = vrot.slane %v53, 6
  %v56 = vshll.u32 %v50, 16
  %v58 = vrot.slane %v56, 7
  %v59 = vor.u32 %v55, %v58
  %v61 = vshrl.u32 %v46, 16
  %v63 = vrot.slane %v61, 6
  %v64 = vshll.u32 %v46, 16
  %v66 = vrot.slane %v64, 7
  %v67 = vor.u32 %v63, %v66
  %v68 = vshrl.u32 %v52, 16
  %v70 = vrot.slane %v68, 6
  %v71 = vshll.u32 %v52, 16
  %v73 = vrot.slane %v71, 7
  %v74 = vor.u32 %v70, %v73
  %vm78 = vcmask 1041408
  %vm79 = vsmask.f32 1280
  %vm80 = vmand %vm78, %vm79
  %v81 = vsel %vm80, 0, %v59
  %v82 = vsel %vm80, 0, %v67
  %v83 = vsel %vm80, 0, %v74
  %vm84 = vcmask 1045504
  %vm85 = vsmask.f32 5376
  %vm86 = vmand %vm84, %vm85
  %v87 = vsel %vm86, %v81, 0
  %v88 = vsel %vm86, %v82, 0
  %v89 = vsel %vm86, %v83, 0
  %v90 = vpack.c.bf16 %v33, %v33
  %v91 = vpack.c.bf16 %v34, %v34
  %94 = vrot.lane.b32.xlu0 %v90, 48
  %v95 = vpop.permute.xlu0 %94
  %96 = vrot.lane.b32.xlu0 %v91, 48
  %v97 = vpop.permute.xlu0 %96
  %v98 = vsel %vm45, %v95, %v97
  %v100 = vsel %vm47, 0, %v95
  %v102 = vsel %vm47, %v97, 0
  %v103 = vshrl.u32 %v100, 16
  %v105 = vrot.slane %v103, 6
  %v106 = vshll.u32 %v100, 16
  %v108 = vrot.slane %v106, 7
  %v109 = vor.u32 %v105, %v108
  %v111 = vshrl.u32 %v98, 16
  %v113 = vrot.slane %v111, 6
  %v114 = vshll.u32 %v98, 16
  %v116 = vrot.slane %v114, 7
  %v117 = vor.u32 %v113, %v116
  %v118 = vshrl.u32 %v102, 16
  %v120 = vrot.slane %v118, 6
  %v121 = vshll.u32 %v102, 16
  %v123 = vrot.slane %v121, 7
  %v124 = vor.u32 %v120, %v123
  %v128 = vsel %vm80, 0, %v109
  %v129 = vsel %vm80, 0, %v117
  %v130 = vsel %vm80, 0, %v124
  %v131 = vsel %vm86, %v128, 0
  %v132 = vsel %vm86, %v129, 0
  %v133 = vsel %vm86, %v130, 0
  %s134 = scalar_lea.vmem %s0, 64
  %v135 = vld [vmem:[%s134] sm:$0xff]
  %v136 = vld [vmem:[%s134 + $0x8] sm:$0xff]
  %s137 = scalar_lea.vmem %s0, 80
  %v138 = vld [vmem:[%s137] sm:$0xff]
  %v139 = vld [vmem:[%s137 + $0x8] sm:$0xff]
  %v140 = vadd.f32 %v135, %v138
  %v141 = vadd.f32 %v136, %v139
  %v142 = vmax.f32 %v135, %v138
  %v143 = vmax.f32 %v136, %v139
  %s144 = scalar_lea.vmem %s0, 96
  %v145 = vld [vmem:[%s144] sm:$0xff]
  %v146 = vld [vmem:[%s144 + $0x8] sm:$0xff]
  %v147 = vadd.f32 %v140, %v145
  %v148 = vadd.f32 %v141, %v146
  %v149 = vmax.f32 %v142, %v145
  %v150 = vmax.f32 %v143, %v146
  %s151 = scalar_lea.vmem %s0, 112
  %v152 = vld [vmem:[%s151] sm:$0xff]
  %v153 = vld [vmem:[%s151 + $0x8] sm:$0xff]
  %v154 = vadd.f32 %v147, %v152
  %v155 = vadd.f32 %v148, %v153
  %v156 = vmax.f32 %v149, %v152
  %v157 = vmax.f32 %v150, %v153
  %v158 = vmul.f32 %v154, 0.25
  %v159 = vmul.f32 %v155, 0.25
  %v160 = vpack.c.bf16 %v158, %v158
  %v161 = vpack.c.bf16 %v159, %v159
  %164 = vrot.lane.b32.xlu0 %v160, 48
  %v165 = vpop.permute.xlu0 %164
  %166 = vrot.lane.b32.xlu0 %v161, 48
  %v167 = vpop.permute.xlu0 %166
  %v168 = vsel %vm45, %v165, %v167
  %v170 = vsel %vm47, 0, %v165
  %v172 = vsel %vm47, %v167, 0
  %v173 = vshrl.u32 %v170, 16
  %v175 = vrot.slane %v173, 6
  %v176 = vshll.u32 %v170, 16
  %v178 = vrot.slane %v176, 7
  %v179 = vor.u32 %v175, %v178
  %v181 = vshrl.u32 %v168, 16
  %v183 = vrot.slane %v181, 6
  %v184 = vshll.u32 %v168, 16
  %v186 = vrot.slane %v184, 7
  %v187 = vor.u32 %v183, %v186
  %v188 = vshrl.u32 %v172, 16
  %v190 = vrot.slane %v188, 6
  %v191 = vshll.u32 %v172, 16
  %v193 = vrot.slane %v191, 7
  %v194 = vor.u32 %v190, %v193
  %v198 = vsel %vm80, 0, %v179
  %v199 = vsel %vm80, 0, %v187
  %v200 = vsel %vm80, 0, %v194
  %v201 = vsel %vm86, %v198, 0
  %v202 = vsel %vm86, %v199, 0
  %v203 = vsel %vm86, %v200, 0
  %v204 = vpack.c.bf16 %v156, %v156
  %v205 = vpack.c.bf16 %v157, %v157
  %208 = vrot.lane.b32.xlu0 %v204, 48
  %v209 = vpop.permute.xlu0 %208
  %210 = vrot.lane.b32.xlu0 %v205, 48
  %v211 = vpop.permute.xlu0 %210
  %v212 = vsel %vm45, %v209, %v211
  %v214 = vsel %vm47, 0, %v209
  %v216 = vsel %vm47, %v211, 0
  %v217 = vshrl.u32 %v214, 16
  %v219 = vrot.slane %v217, 6
  %v220 = vshll.u32 %v214, 16
  %v222 = vrot.slane %v220, 7
  %v223 = vor.u32 %v219, %v222
  %v225 = vshrl.u32 %v212, 16
  %v227 = vrot.slane %v225, 6
  %v228 = vshll.u32 %v212, 16
  %v230 = vrot.slane %v228, 7
  %v231 = vor.u32 %v227, %v230
  %v232 = vshrl.u32 %v216, 16
  %v234 = vrot.slane %v232, 6
  %v235 = vshll.u32 %v216, 16
  %v237 = vrot.slane %v235, 7
  %v238 = vor.u32 %v234, %v237
  %v242 = vsel %vm80, 0, %v223
  %v243 = vsel %vm80, 0, %v231
  %v244 = vsel %vm80, 0, %v238
  %v245 = vsel %vm86, %v242, 0
  %v246 = vsel %vm86, %v243, 0
  %v247 = vsel %vm86, %v244, 0
  %v250 = vrot.slane %v88, 4
  %v251 = vrot.slane %v89, 4
  %v254 = vrot.slane %v202, 4
  %v255 = vrot.slane %v203, 4
  %vm256 = vcmask 1043456
  %v259 = vsel %vm256, %v87, %v250
  %v263 = vsel %vm256, %v88, %v251
  %v266 = vsel %vm256, %v201, %v254
  %v270 = vsel %vm256, %v202, %v255
  %v271 = vld [vmem:[%s1] sm:$0xf]
  %v272 = vld [vmem:[%s1 + $0x4] sm:$0xf]
  %v273 = vld [vmem:[%s1 + $0x8] sm:$0xf]
  %v274 = vld [vmem:[%s1 + $0xc] sm:$0xf]
  %v275 = vld [vmem:[%s1 + $0x10] sm:$0xf]
  %v276 = vld [vmem:[%s1 + $0x14] sm:$0xf]
  %v277 = vld [vmem:[%s1 + $0x18] sm:$0xf]
  %v278 = vld [vmem:[%s1 + $0x1c] sm:$0xf]
  %v279 = vld [vmem:[%s1 + $0x20] sm:$0xf]
  %v280 = vld [vmem:[%s1 + $0x24] sm:$0xf]
  %v281 = vld [vmem:[%s1 + $0x28] sm:$0xf]
  %v282 = vld [vmem:[%s1 + $0x2c] sm:$0xf]
  %v283 = vld [vmem:[%s1 + $0x30] sm:$0xf]
  %v284 = vld [vmem:[%s1 + $0x34] sm:$0xf]
  %v285 = vld [vmem:[%s1 + $0x38] sm:$0xf]
  %v286 = vld [vmem:[%s1 + $0x3c] sm:$0xf]
  %v287 = vld [vmem:[%s1 + $0x40] sm:$0xf]
  %v288 = vld [vmem:[%s1 + $0x44] sm:$0xf]
  %v289 = vld [vmem:[%s1 + $0x48] sm:$0xf]
  %v290 = vld [vmem:[%s1 + $0x4c] sm:$0xf]
  %v291 = vld [vmem:[%s1 + $0x50] sm:$0xf]
  %v292 = vld [vmem:[%s1 + $0x54] sm:$0xf]
  %v293 = vld [vmem:[%s1 + $0x58] sm:$0xf]
  %v294 = vld [vmem:[%s1 + $0x5c] sm:$0xf]
  %v295 = vld [vmem:[%s1 + $0x60] sm:$0xf]
  %v296 = vld [vmem:[%s1 + $0x64] sm:$0xf]
  %v297 = vld [vmem:[%s1 + $0x68] sm:$0xf]
  %v298 = vld [vmem:[%s1 + $0x6c] sm:$0xf]
  %v299 = vshrl.u32 %v87, 16
  %v301 = vshll.u32 %v87, 16
  %v303 = vrot.slane %v301, 1
  %v304 = vor.u32 %v299, %v303
  %v305 = vshrl.u32 %v88, 16
  %v307 = vshll.u32 %v88, 16
  %v309 = vrot.slane %v307, 1
  %v310 = vor.u32 %v305, %v309
  %v311 = vrot.slane %v305, 4
  %v312 = vrot.slane %v307, 5
  %v313 = vor.u32 %v311, %v312
  %v315 = vshrl.u32 %v89, 16
  %v317 = vrot.slane %v315, 4
  %v318 = vshll.u32 %v89, 16
  %v320 = vrot.slane %v318, 5
  %v321 = vor.u32 %v317, %v320
  %v322 = vshrl.u32 %v201, 16
  %v324 = vshll.u32 %v201, 16
  %v326 = vrot.slane %v324, 1
  %v327 = vor.u32 %v322, %v326
  %v328 = vshrl.u32 %v202, 16
  %v330 = vshll.u32 %v202, 16
  %v332 = vrot.slane %v330, 1
  %v333 = vor.u32 %v328, %v332
  %v334 = vrot.slane %v328, 4
  %v335 = vrot.slane %v330, 5
  %v336 = vor.u32 %v334, %v335
  %v338 = vshrl.u32 %v203, 16
  %v340 = vrot.slane %v338, 4
  %v341 = vshll.u32 %v203, 16
  %v343 = vrot.slane %v341, 5
  %v344 = vor.u32 %v340, %v343
  %v347 = vsel %vm256, %v304, %v313
  %v351 = vsel %vm256, %v310, %v321
  %v354 = vsel %vm256, %v327, %v336
  %v358 = vsel %vm256, %v333, %v344
  %s359 = scalar_lea.vmem %s1, 112
  %v360 = vld [vmem:[%s359] sm:$0xf]
  %v361 = vld [vmem:[%s359 + $0x4] sm:$0xf]
  %v362 = vld [vmem:[%s359 + $0x8] sm:$0xf]
  %v363 = vld [vmem:[%s359 + $0xc] sm:$0xf]
  %v364 = vld [vmem:[%s359 + $0x10] sm:$0xf]
  %v365 = vld [vmem:[%s359 + $0x14] sm:$0xf]
  %v366 = vld [vmem:[%s359 + $0x18] sm:$0xf]
  %v367 = vld [vmem:[%s359 + $0x1c] sm:$0xf]
  %v368 = vld [vmem:[%s359 + $0x20] sm:$0xf]
  %v369 = vld [vmem:[%s359 + $0x24] sm:$0xf]
  %v370 = vld [vmem:[%s359 + $0x28] sm:$0xf]
  %v371 = vld [vmem:[%s359 + $0x2c] sm:$0xf]
  %v372 = vld [vmem:[%s359 + $0x30] sm:$0xf]
  %v373 = vld [vmem:[%s359 + $0x34] sm:$0xf]
  %v374 = vld [vmem:[%s359 + $0x38] sm:$0xf]
  %v375 = vld [vmem:[%s359 + $0x3c] sm:$0xf]
  %v376 = vld [vmem:[%s359 + $0x40] sm:$0xf]
  %v377 = vld [vmem:[%s359 + $0x44] sm:$0xf]
  %v378 = vld [vmem:[%s359 + $0x48] sm:$0xf]
  %v379 = vld [vmem:[%s359 + $0x4c] sm:$0xf]
  %v380 = vld [vmem:[%s359 + $0x50] sm:$0xf]
  %v381 = vld [vmem:[%s359 + $0x54] sm:$0xf]
  %v382 = vld [vmem:[%s359 + $0x58] sm:$0xf]
  %v383 = vld [vmem:[%s359 + $0x5c] sm:$0xf]
  %v384 = vld [vmem:[%s359 + $0x60] sm:$0xf]
  %v385 = vld [vmem:[%s359 + $0x64] sm:$0xf]
  %v386 = vld [vmem:[%s359 + $0x68] sm:$0xf]
  %v387 = vld [vmem:[%s359 + $0x6c] sm:$0xf]
  %v416 = vunpack.c.l.b16 %v360
  %v417 = vunpack.c.l.b16 %v361
  %v418 = vunpack.c.l.b16 %v362
  %v419 = vunpack.c.l.b16 %v363
  %v420 = vunpack.c.l.b16 %v364
  %v421 = vunpack.c.l.b16 %v365
  %v422 = vunpack.c.l.b16 %v366
  %v423 = vunpack.c.l.b16 %v367
  %v424 = vunpack.c.l.b16 %v368
  %v425 = vunpack.c.l.b16 %v369
  %v426 = vunpack.c.l.b16 %v370
  %v427 = vunpack.c.l.b16 %v371
  %v428 = vunpack.c.l.b16 %v372
  %v429 = vunpack.c.l.b16 %v373
  %v430 = vunpack.c.l.b16 %v374
  %v431 = vunpack.c.l.b16 %v375
  %v432 = vunpack.c.l.b16 %v376
  %v433 = vunpack.c.l.b16 %v377
  %v434 = vunpack.c.l.b16 %v378
  %v435 = vunpack.c.l.b16 %v379
  %v436 = vunpack.c.l.b16 %v380
  %v437 = vunpack.c.l.b16 %v381
  %v438 = vunpack.c.l.b16 %v382
  %v439 = vunpack.c.l.b16 %v383
  %v440 = vunpack.c.l.b16 %v384
  %v441 = vunpack.c.l.b16 %v385
  %v442 = vunpack.c.l.b16 %v386
  %v443 = vunpack.c.l.b16 %v387
  %v444 = vpack.c.b16 %v417, %v416
  %v445 = vpack.c.b16 %v419, %v418
  %v446 = vpack.c.b16 %v421, %v420
  %v447 = vpack.c.b16 %v423, %v422
  %v448 = vpack.c.b16 %v425, %v424
  %v449 = vpack.c.b16 %v427, %v426
  %v450 = vpack.c.b16 %v429, %v428
  %v451 = vpack.c.b16 %v431, %v430
  %v452 = vpack.c.b16 %v433, %v432
  %v453 = vpack.c.b16 %v435, %v434
  %v454 = vpack.c.b16 %v437, %v436
  %v455 = vpack.c.b16 %v439, %v438
  %v456 = vpack.c.b16 %v441, %v440
  %v457 = vpack.c.b16 %v443, %v442
  %vm472 = vcmask 785408
  %v473 = vsel %vm472, %v351, 0
  %v475 = vsel %vm472, %v358, 0
  %477 = vmatprep.subr.bf16.mxu0 0
  %478 = vmatpush1.bf16.msra.mxu0 %v444
  %479 = vmatprep.subr.bf16.mxu0 0
  %480 = vmatpush1.bf16.msra.mxu0 %v445
  %481 = vmatprep.subr.bf16.mxu0 0
  %482 = vmatpush1.bf16.msra.mxu0 %v446
  %483 = vmatprep.subr.bf16.mxu0 0
  %484 = vmatpush1.bf16.msra.mxu0 %v447
  %485 = vmatprep.subr.bf16.mxu0 0
  %486 = vmatpush1.bf16.msra.mxu0 %v448
  %487 = vmatprep.subr.bf16.mxu0 0
  %488 = vmatpush1.bf16.msra.mxu0 %v449
  %489 = vmatprep.subr.bf16.mxu0 0
  %490 = vmatpush1.bf16.msra.mxu0 %v450
  %491 = vmatprep.subr.bf16.mxu0 0
  %492 = vmatpush1.bf16.msra.mxu0 %v451
  %493 = vmatprep.subr.bf16.mxu0 0
  %494 = vmatpush1.bf16.msra.mxu0 %v452
  %495 = vmatprep.subr.bf16.mxu0 0
  %496 = vmatpush1.bf16.msra.mxu0 %v453
  %497 = vmatprep.subr.bf16.mxu0 0
  %498 = vmatpush1.bf16.msra.mxu0 %v454
  %499 = vmatprep.subr.bf16.mxu0 0
  %500 = vmatpush1.bf16.msra.mxu0 %v455
  %501 = vmatprep.subr.bf16.mxu0 0
  %502 = vmatpush1.bf16.msra.mxu0 %v456
  %503 = vmatprep.subr.bf16.mxu0 0
  %504 = vmatpush1.bf16.msra.mxu0 %v457
  %505 = vmatprep.subr.bf16.mxu0 0
  %506 = vmatpush1.bf16.msra.mxu0 0
  %507 = vmatprep.subr.bf16.mxu0 0
  %508 = vmatpush1.bf16.msra.mxu0 0
  %509 = vmatprep.mubr.bf16.mxu0 %v473
  %510 = vmatmul.mubr.bf16.gmra.mrb[0].mxu0 %v347
  %v511 = vpop.f32.mrb[0].mxu0
  %v512 = vadd.f32 0.0, %v511
  %v513 = vpop.f32.mrb[0].mxu0
  %v514 = vpop.f32.mrb[0].mxu0
  %v515 = vadd.f32 0.0, %v514
  %v516 = vpop.f32.mrb[0].mxu0
  %517 = vmatprep.mubr.bf16.mxu0 %v475
  %518 = vmatmul.mubr.bf16.gmra.mrb[0].mxu0 %v354
  %v519 = vpop.f32.mrb[0].mxu0
  %v520 = vadd.f32 0.0, %v519
  %v521 = vpop.f32.mrb[0].mxu0
  %v522 = vpop.f32.mrb[0].mxu0
  %v523 = vadd.f32 0.0, %v522
  %v524 = vpop.f32.mrb[0].mxu0
  %525 = vdwg.mxu0
  %v554 = vunpack.c.l.b16 %v271
  %v555 = vunpack.c.l.b16 %v272
  %v556 = vunpack.c.l.b16 %v273
  %v557 = vunpack.c.l.b16 %v274
  %v558 = vunpack.c.l.b16 %v275
  %v559 = vunpack.c.l.b16 %v276
  %v560 = vunpack.c.l.b16 %v277
  %v561 = vunpack.c.l.b16 %v278
  %v562 = vunpack.c.l.b16 %v279
  %v563 = vunpack.c.l.b16 %v280
  %v564 = vunpack.c.l.b16 %v281
  %v565 = vunpack.c.l.b16 %v282
  %v566 = vunpack.c.l.b16 %v283
  %v567 = vunpack.c.l.b16 %v284
  %v568 = vunpack.c.l.b16 %v285
  %v569 = vunpack.c.l.b16 %v286
  %v570 = vunpack.c.l.b16 %v287
  %v571 = vunpack.c.l.b16 %v288
  %v572 = vunpack.c.l.b16 %v289
  %v573 = vunpack.c.l.b16 %v290
  %v574 = vunpack.c.l.b16 %v291
  %v575 = vunpack.c.l.b16 %v292
  %v576 = vunpack.c.l.b16 %v293
  %v577 = vunpack.c.l.b16 %v294
  %v578 = vunpack.c.l.b16 %v295
  %v579 = vunpack.c.l.b16 %v296
  %v580 = vunpack.c.l.b16 %v297
  %v581 = vunpack.c.l.b16 %v298
  %v582 = vpack.c.b16 %v555, %v554
  %v583 = vpack.c.b16 %v557, %v556
  %v584 = vpack.c.b16 %v559, %v558
  %v585 = vpack.c.b16 %v561, %v560
  %v586 = vpack.c.b16 %v563, %v562
  %v587 = vpack.c.b16 %v565, %v564
  %v588 = vpack.c.b16 %v567, %v566
  %v589 = vpack.c.b16 %v569, %v568
  %v590 = vpack.c.b16 %v571, %v570
  %v591 = vpack.c.b16 %v573, %v572
  %v592 = vpack.c.b16 %v575, %v574
  %v593 = vpack.c.b16 %v577, %v576
  %v594 = vpack.c.b16 %v579, %v578
  %v595 = vpack.c.b16 %v581, %v580
  %v610 = vsel %vm472, %v263, 0
  %v612 = vsel %vm472, %v270, 0
  %614 = vmatprep.subr.bf16.mxu0 0
  %615 = vmatpush1.bf16.msra.mxu0 %v582
  %616 = vmatprep.subr.bf16.mxu0 0
  %617 = vmatpush1.bf16.msra.mxu0 %v583
  %618 = vmatprep.subr.bf16.mxu0 0
  %619 = vmatpush1.bf16.msra.mxu0 %v584
  %620 = vmatprep.subr.bf16.mxu0 0
  %621 = vmatpush1.bf16.msra.mxu0 %v585
  %622 = vmatprep.subr.bf16.mxu0 0
  %623 = vmatpush1.bf16.msra.mxu0 %v586
  %624 = vmatprep.subr.bf16.mxu0 0
  %625 = vmatpush1.bf16.msra.mxu0 %v587
  %626 = vmatprep.subr.bf16.mxu0 0
  %627 = vmatpush1.bf16.msra.mxu0 %v588
  %628 = vmatprep.subr.bf16.mxu0 0
  %629 = vmatpush1.bf16.msra.mxu0 %v589
  %630 = vmatprep.subr.bf16.mxu0 0
  %631 = vmatpush1.bf16.msra.mxu0 %v590
  %632 = vmatprep.subr.bf16.mxu0 0
  %633 = vmatpush1.bf16.msra.mxu0 %v591
  %634 = vmatprep.subr.bf16.mxu0 0
  %635 = vmatpush1.bf16.msra.mxu0 %v592
  %636 = vmatprep.subr.bf16.mxu0 0
  %637 = vmatpush1.bf16.msra.mxu0 %v593
  %638 = vmatprep.subr.bf16.mxu0 0
  %639 = vmatpush1.bf16.msra.mxu0 %v594
  %640 = vmatprep.subr.bf16.mxu0 0
  %641 = vmatpush1.bf16.msra.mxu0 %v595
  %642 = vmatprep.subr.bf16.mxu0 0
  %643 = vmatpush1.bf16.msra.mxu0 0
  %644 = vmatprep.subr.bf16.mxu0 0
  %645 = vmatpush1.bf16.msra.mxu0 0
  %646 = vmatprep.mubr.bf16.mxu0 %v610
  %647 = vmatmul.mubr.bf16.gmra.mrb[0].mxu0 %v259
  %v648 = vpop.f32.mrb[0].mxu0
  %v649 = vadd.f32 %v512, %v648
  %v650 = vpop.f32.mrb[0].mxu0
  %v651 = vpop.f32.mrb[0].mxu0
  %v652 = vadd.f32 %v515, %v651
  %v653 = vpop.f32.mrb[0].mxu0
  %654 = vmatprep.mubr.bf16.mxu0 %v612
  %655 = vmatmul.mubr.bf16.gmra.mrb[0].mxu0 %v266
  %v656 = vpop.f32.mrb[0].mxu0
  %v657 = vadd.f32 %v520, %v656
  %v658 = vpop.f32.mrb[0].mxu0
  %v659 = vpop.f32.mrb[0].mxu0
  %v660 = vadd.f32 %v523, %v659
  %v661 = vpop.f32.mrb[0].mxu0
  %662 = vdwg.mxu0
  %v664 = vrot.slane %v87, 1
  %v665 = vrot.slane %v88, 1
  %v666 = vrot.slane %v88, 5
  %v667 = vrot.slane %v89, 5
  %v669 = vrot.slane %v201, 1
  %v670 = vrot.slane %v202, 1
  %v671 = vrot.slane %v202, 5
  %v672 = vrot.slane %v203, 5
  %v675 = vsel %vm256, %v664, %v666
  %v679 = vsel %vm256, %v665, %v667
  %v682 = vsel %vm256, %v669, %v671
  %v686 = vsel %vm256, %v670, %v672
  %s687 = scalar_lea.vmem %s1, 224
  %v688 = vld [vmem:[%s687] sm:$0xf]
  %v689 = vld [vmem:[%s687 + $0x4] sm:$0xf]
  %v690 = vld [vmem:[%s687 + $0x8] sm:$0xf]
  %v691 = vld [vmem:[%s687 + $0xc] sm:$0xf]
  %v692 = vld [vmem:[%s687 + $0x10] sm:$0xf]
  %v693 = vld [vmem:[%s687 + $0x14] sm:$0xf]
  %v694 = vld [vmem:[%s687 + $0x18] sm:$0xf]
  %v695 = vld [vmem:[%s687 + $0x1c] sm:$0xf]
  %v696 = vld [vmem:[%s687 + $0x20] sm:$0xf]
  %v697 = vld [vmem:[%s687 + $0x24] sm:$0xf]
  %v698 = vld [vmem:[%s687 + $0x28] sm:$0xf]
  %v699 = vld [vmem:[%s687 + $0x2c] sm:$0xf]
  %v700 = vld [vmem:[%s687 + $0x30] sm:$0xf]
  %v701 = vld [vmem:[%s687 + $0x34] sm:$0xf]
  %v702 = vld [vmem:[%s687 + $0x38] sm:$0xf]
  %v703 = vld [vmem:[%s687 + $0x3c] sm:$0xf]
  %v704 = vld [vmem:[%s687 + $0x40] sm:$0xf]
  %v705 = vld [vmem:[%s687 + $0x44] sm:$0xf]
  %v706 = vld [vmem:[%s687 + $0x48] sm:$0xf]
  %v707 = vld [vmem:[%s687 + $0x4c] sm:$0xf]
  %v708 = vld [vmem:[%s687 + $0x50] sm:$0xf]
  %v709 = vld [vmem:[%s687 + $0x54] sm:$0xf]
  %v710 = vld [vmem:[%s687 + $0x58] sm:$0xf]
  %v711 = vld [vmem:[%s687 + $0x5c] sm:$0xf]
  %v712 = vld [vmem:[%s687 + $0x60] sm:$0xf]
  %v713 = vld [vmem:[%s687 + $0x64] sm:$0xf]
  %v714 = vld [vmem:[%s687 + $0x68] sm:$0xf]
  %v715 = vld [vmem:[%s687 + $0x6c] sm:$0xf]
  %v744 = vunpack.c.l.b16 %v688
  %v745 = vunpack.c.l.b16 %v689
  %v746 = vunpack.c.l.b16 %v690
  %v747 = vunpack.c.l.b16 %v691
  %v748 = vunpack.c.l.b16 %v692
  %v749 = vunpack.c.l.b16 %v693
  %v750 = vunpack.c.l.b16 %v694
  %v751 = vunpack.c.l.b16 %v695
  %v752 = vunpack.c.l.b16 %v696
  %v753 = vunpack.c.l.b16 %v697
  %v754 = vunpack.c.l.b16 %v698
  %v755 = vunpack.c.l.b16 %v699
  %v756 = vunpack.c.l.b16 %v700
  %v757 = vunpack.c.l.b16 %v701
  %v758 = vunpack.c.l.b16 %v702
  %v759 = vunpack.c.l.b16 %v703
  %v760 = vunpack.c.l.b16 %v704
  %v761 = vunpack.c.l.b16 %v705
  %v762 = vunpack.c.l.b16 %v706
  %v763 = vunpack.c.l.b16 %v707
  %v764 = vunpack.c.l.b16 %v708
  %v765 = vunpack.c.l.b16 %v709
  %v766 = vunpack.c.l.b16 %v710
  %v767 = vunpack.c.l.b16 %v711
  %v768 = vunpack.c.l.b16 %v712
  %v769 = vunpack.c.l.b16 %v713
  %v770 = vunpack.c.l.b16 %v714
  %v771 = vunpack.c.l.b16 %v715
  %v772 = vpack.c.b16 %v745, %v744
  %v773 = vpack.c.b16 %v747, %v746
  %v774 = vpack.c.b16 %v749, %v748
  %v775 = vpack.c.b16 %v751, %v750
  %v776 = vpack.c.b16 %v753, %v752
  %v777 = vpack.c.b16 %v755, %v754
  %v778 = vpack.c.b16 %v757, %v756
  %v779 = vpack.c.b16 %v759, %v758
  %v780 = vpack.c.b16 %v761, %v760
  %v781 = vpack.c.b16 %v763, %v762
  %v782 = vpack.c.b16 %v765, %v764
  %v783 = vpack.c.b16 %v767, %v766
  %v784 = vpack.c.b16 %v769, %v768
  %v785 = vpack.c.b16 %v771, %v770
  %v800 = vsel %vm472, %v679, 0
  %v802 = vsel %vm472, %v686, 0
  %804 = vmatprep.subr.bf16.mxu0 0
  %805 = vmatpush1.bf16.msra.mxu0 %v772
  %806 = vmatprep.subr.bf16.mxu0 0
  %807 = vmatpush1.bf16.msra.mxu0 %v773
  %808 = vmatprep.subr.bf16.mxu0 0
  %809 = vmatpush1.bf16.msra.mxu0 %v774
  %810 = vmatprep.subr.bf16.mxu0 0
  %811 = vmatpush1.bf16.msra.mxu0 %v775
  %812 = vmatprep.subr.bf16.mxu0 0
  %813 = vmatpush1.bf16.msra.mxu0 %v776
  %814 = vmatprep.subr.bf16.mxu0 0
  %815 = vmatpush1.bf16.msra.mxu0 %v777
  %816 = vmatprep.subr.bf16.mxu0 0
  %817 = vmatpush1.bf16.msra.mxu0 %v778
  %818 = vmatprep.subr.bf16.mxu0 0
  %819 = vmatpush1.bf16.msra.mxu0 %v779
  %820 = vmatprep.subr.bf16.mxu0 0
  %821 = vmatpush1.bf16.msra.mxu0 %v780
  %822 = vmatprep.subr.bf16.mxu0 0
  %823 = vmatpush1.bf16.msra.mxu0 %v781
  %824 = vmatprep.subr.bf16.mxu0 0
  %825 = vmatpush1.bf16.msra.mxu0 %v782
  %826 = vmatprep.subr.bf16.mxu0 0
  %827 = vmatpush1.bf16.msra.mxu0 %v783
  %828 = vmatprep.subr.bf16.mxu0 0
  %829 = vmatpush1.bf16.msra.mxu0 %v784
  %830 = vmatprep.subr.bf16.mxu0 0
  %831 = vmatpush1.bf16.msra.mxu0 %v785
  %832 = vmatprep.subr.bf16.mxu0 0
  %833 = vmatpush1.bf16.msra.mxu0 0
  %834 = vmatprep.subr.bf16.mxu0 0
  %835 = vmatpush1.bf16.msra.mxu0 0
  %836 = vmatprep.mubr.bf16.mxu0 %v800
  %837 = vmatmul.mubr.bf16.gmra.mrb[0].mxu0 %v675
  %v838 = vpop.f32.mrb[0].mxu0
  %v839 = vadd.f32 0.0, %v838
  %v840 = vpop.f32.mrb[0].mxu0
  %v841 = vpop.f32.mrb[0].mxu0
  %v842 = vadd.f32 0.0, %v841
  %v843 = vpop.f32.mrb[0].mxu0
  %844 = vmatprep.mubr.bf16.mxu0 %v802
  %845 = vmatmul.mubr.bf16.gmra.mrb[0].mxu0 %v682
  %v846 = vpop.f32.mrb[0].mxu0
  %v847 = vadd.f32 0.0, %v846
  %v848 = vpop.f32.mrb[0].mxu0
  %v849 = vpop.f32.mrb[0].mxu0
  %v850 = vadd.f32 0.0, %v849
  %v851 = vpop.f32.mrb[0].mxu0
  %852 = vdwg.mxu0
  %v853 = vadd.f32 %v649, %v839
  %v854 = vadd.f32 %v652, %v842
  %v855 = vadd.f32 %v657, %v847
  %v856 = vadd.f32 %v660, %v850
  %v857 = vrot.slane %v299, 1
  %v858 = vrot.slane %v301, 2
  %v859 = vor.u32 %v857, %v858
  %v860 = vrot.slane %v305, 1
  %v861 = vrot.slane %v307, 2
  %v862 = vor.u32 %v860, %v861
  %v863 = vrot.slane %v305, 5
  %v864 = vrot.slane %v307, 6
  %v865 = vor.u32 %v863, %v864
  %v866 = vrot.slane %v315, 5
  %v867 = vrot.slane %v318, 6
  %v868 = vor.u32 %v866, %v867
  %v869 = vrot.slane %v322, 1
  %v870 = vrot.slane %v324, 2
  %v871 = vor.u32 %v869, %v870
  %v872 = vrot.slane %v328, 1
  %v873 = vrot.slane %v330, 2
  %v874 = vor.u32 %v872, %v873
  %v875 = vrot.slane %v328, 5
  %v876 = vrot.slane %v330, 6
  %v877 = vor.u32 %v875, %v876
  %v878 = vrot.slane %v338, 5
  %v879 = vrot.slane %v341, 6
  %v880 = vor.u32 %v878, %v879
  %v883 = vsel %vm256, %v859, %v865
  %v887 = vsel %vm256, %v862, %v868
  %v890 = vsel %vm256, %v871, %v877
  %v894 = vsel %vm256, %v874, %v880
  %s895 = scalar_lea.vmem %s1, 336
  %v896 = vld [vmem:[%s895] sm:$0xf]
  %v897 = vld [vmem:[%s895 + $0x4] sm:$0xf]
  %v898 = vld [vmem:[%s895 + $0x8] sm:$0xf]
  %v899 = vld [vmem:[%s895 + $0xc] sm:$0xf]
  %v900 = vld [vmem:[%s895 + $0x10] sm:$0xf]
  %v901 = vld [vmem:[%s895 + $0x14] sm:$0xf]
  %v902 = vld [vmem:[%s895 + $0x18] sm:$0xf]
  %v903 = vld [vmem:[%s895 + $0x1c] sm:$0xf]
  %v904 = vld [vmem:[%s895 + $0x20] sm:$0xf]
  %v905 = vld [vmem:[%s895 + $0x24] sm:$0xf]
  %v906 = vld [vmem:[%s895 + $0x28] sm:$0xf]
  %v907 = vld [vmem:[%s895 + $0x2c] sm:$0xf]
  %v908 = vld [vmem:[%s895 + $0x30] sm:$0xf]
  %v909 = vld [vmem:[%s895 + $0x34] sm:$0xf]
  %v910 = vld [vmem:[%s895 + $0x38] sm:$0xf]
  %v911 = vld [vmem:[%s895 + $0x3c] sm:$0xf]
  %v912 = vld [vmem:[%s895 + $0x40] sm:$0xf]
  %v913 = vld [vmem:[%s895 + $0x44] sm:$0xf]
  %v914 = vld [vmem:[%s895 + $0x48] sm:$0xf]
  %v915 = vld [vmem:[%s895 + $0x4c] sm:$0xf]
  %v916 = vld [vmem:[%s895 + $0x50] sm:$0xf]
  %v917 = vld [vmem:[%s895 + $0x54] sm:$0xf]
  %v918 = vld [vmem:[%s895 + $0x58] sm:$0xf]
  %v919 = vld [vmem:[%s895 + $0x5c] sm:$0xf]
  %v920 = vld [vmem:[%s895 + $0x60] sm:$0xf]
  %v921 = vld [vmem:[%s895 + $0x64] sm:$0xf]
  %v922 = vld [vmem:[%s895 + $0x68] sm:$0xf]
  %v923 = vld [vmem:[%s895 + $0x6c] sm:$0xf]
  %v952 = vunpack.c.l.b16 %v896
  %v953 = vunpack.c.l.b16 %v897
  %v954 = vunpack.c.l.b16 %v898
  %v955 = vunpack.c.l.b16 %v899
  %v956 = vunpack.c.l.b16 %v900
  %v957 = vunpack.c.l.b16 %v901
  %v958 = vunpack.c.l.b16 %v902
  %v959 = vunpack.c.l.b16 %v903
  %v960 = vunpack.c.l.b16 %v904
  %v961 = vunpack.c.l.b16 %v905
  %v962 = vunpack.c.l.b16 %v906
  %v963 = vunpack.c.l.b16 %v907
  %v964 = vunpack.c.l.b16 %v908
  %v965 = vunpack.c.l.b16 %v909
  %v966 = vunpack.c.l.b16 %v910
  %v967 = vunpack.c.l.b16 %v911
  %v968 = vunpack.c.l.b16 %v912
  %v969 = vunpack.c.l.b16 %v913
  %v970 = vunpack.c.l.b16 %v914
  %v971 = vunpack.c.l.b16 %v915
  %v972 = vunpack.c.l.b16 %v916
  %v973 = vunpack.c.l.b16 %v917
  %v974 = vunpack.c.l.b16 %v918
  %v975 = vunpack.c.l.b16 %v919
  %v976 = vunpack.c.l.b16 %v920
  %v977 = vunpack.c.l.b16 %v921
  %v978 = vunpack.c.l.b16 %v922
  %v979 = vunpack.c.l.b16 %v923
  %v980 = vpack.c.b16 %v953, %v952
  %v981 = vpack.c.b16 %v955, %v954
  %v982 = vpack.c.b16 %v957, %v956
  %v983 = vpack.c.b16 %v959, %v958
  %v984 = vpack.c.b16 %v961, %v960
  %v985 = vpack.c.b16 %v963, %v962
  %v986 = vpack.c.b16 %v965, %v964
  %v987 = vpack.c.b16 %v967, %v966
  %v988 = vpack.c.b16 %v969, %v968
  %v989 = vpack.c.b16 %v971, %v970
  %v990 = vpack.c.b16 %v973, %v972
  %v991 = vpack.c.b16 %v975, %v974
  %v992 = vpack.c.b16 %v977, %v976
  %v993 = vpack.c.b16 %v979, %v978
  %v1008 = vsel %vm472, %v887, 0
  %v1010 = vsel %vm472, %v894, 0
  %1012 = vmatprep.subr.bf16.mxu0 0
  %1013 = vmatpush1.bf16.msra.mxu0 %v980
  %1014 = vmatprep.subr.bf16.mxu0 0
  %1015 = vmatpush1.bf16.msra.mxu0 %v981
  %1016 = vmatprep.subr.bf16.mxu0 0
  %1017 = vmatpush1.bf16.msra.mxu0 %v982
  %1018 = vmatprep.subr.bf16.mxu0 0
  %1019 = vmatpush1.bf16.msra.mxu0 %v983
  %1020 = vmatprep.subr.bf16.mxu0 0
  %1021 = vmatpush1.bf16.msra.mxu0 %v984
  %1022 = vmatprep.subr.bf16.mxu0 0
  %1023 = vmatpush1.bf16.msra.mxu0 %v985
  %1024 = vmatprep.subr.bf16.mxu0 0
  %1025 = vmatpush1.bf16.msra.mxu0 %v986
  %1026 = vmatprep.subr.bf16.mxu0 0
  %1027 = vmatpush1.bf16.msra.mxu0 %v987
  %1028 = vmatprep.subr.bf16.mxu0 0
  %1029 = vmatpush1.bf16.msra.mxu0 %v988
  %1030 = vmatprep.subr.bf16.mxu0 0
  %1031 = vmatpush1.bf16.msra.mxu0 %v989
  %1032 = vmatprep.subr.bf16.mxu0 0
  %1033 = vmatpush1.bf16.msra.mxu0 %v990
  %1034 = vmatprep.subr.bf16.mxu0 0
  %1035 = vmatpush1.bf16.msra.mxu0 %v991
  %1036 = vmatprep.subr.bf16.mxu0 0
  %1037 = vmatpush1.bf16.msra.mxu0 %v992
  %1038 = vmatprep.subr.bf16.mxu0 0
  %1039 = vmatpush1.bf16.msra.mxu0 %v993
  %1040 = vmatprep.subr.bf16.mxu0 0
  %1041 = vmatpush1.bf16.msra.mxu0 0
  %1042 = vmatprep.subr.bf16.mxu0 0
  %1043 = vmatpush1.bf16.msra.mxu0 0
  %1044 = vmatprep.mubr.bf16.mxu0 %v1008
  %1045 = vmatmul.mubr.bf16.gmra.mrb[0].mxu0 %v883
  %v1046 = vpop.f32.mrb[0].mxu0
  %v1047 = vadd.f32 0.0, %v1046
  %v1048 = vpop.f32.mrb[0].mxu0
  %v1049 = vpop.f32.mrb[0].mxu0
  %v1050 = vadd.f32 0.0, %v1049
  %v1051 = vpop.f32.mrb[0].mxu0
  %1052 = vmatprep.mubr.bf16.mxu0 %v1010
  %1053 = vmatmul.mubr.bf16.gmra.mrb[0].mxu0 %v890
  %v1054 = vpop.f32.mrb[0].mxu0
  %v1055 = vadd.f32 0.0, %v1054
  %v1056 = vpop.f32.mrb[0].mxu0
  %v1057 = vpop.f32.mrb[0].mxu0
  %v1058 = vadd.f32 0.0, %v1057
  %v1059 = vpop.f32.mrb[0].mxu0
  %1060 = vdwg.mxu0
  %v1061 = vadd.f32 %v853, %v1047
  %v1062 = vadd.f32 %v854, %v1050
  %v1063 = vadd.f32 %v855, %v1055
  %v1064 = vadd.f32 %v856, %v1058
  %v1065 = vrot.slane %v87, 2
  %v1066 = vrot.slane %v88, 2
  %v1067 = vrot.slane %v88, 6
  %v1068 = vrot.slane %v89, 6
  %v1069 = vrot.slane %v201, 2
  %v1070 = vrot.slane %v202, 2
  %v1071 = vrot.slane %v202, 6
  %v1072 = vrot.slane %v203, 6
  %v1075 = vsel %vm256, %v1065, %v1067
  %v1079 = vsel %vm256, %v1066, %v1068
  %v1082 = vsel %vm256, %v1069, %v1071
  %v1086 = vsel %vm256, %v1070, %v1072
  %s1087 = scalar_lea.vmem %s1, 448
  %v1088 = vld [vmem:[%s1087] sm:$0xf]
  %v1089 = vld [vmem:[%s1087 + $0x4] sm:$0xf]
  %v1090 = vld [vmem:[%s1087 + $0x8] sm:$0xf]
  %v1091 = vld [vmem:[%s1087 + $0xc] sm:$0xf]
  %v1092 = vld [vmem:[%s1087 + $0x10] sm:$0xf]
  %v1093 = vld [vmem:[%s1087 + $0x14] sm:$0xf]
  %v1094 = vld [vmem:[%s1087 + $0x18] sm:$0xf]
  %v1095 = vld [vmem:[%s1087 + $0x1c] sm:$0xf]
  %v1096 = vld [vmem:[%s1087 + $0x20] sm:$0xf]
  %v1097 = vld [vmem:[%s1087 + $0x24] sm:$0xf]
  %v1098 = vld [vmem:[%s1087 + $0x28] sm:$0xf]
  %v1099 = vld [vmem:[%s1087 + $0x2c] sm:$0xf]
  %v1100 = vld [vmem:[%s1087 + $0x30] sm:$0xf]
  %v1101 = vld [vmem:[%s1087 + $0x34] sm:$0xf]
  %v1102 = vld [vmem:[%s1087 + $0x38] sm:$0xf]
  %v1103 = vld [vmem:[%s1087 + $0x3c] sm:$0xf]
  %v1104 = vld [vmem:[%s1087 + $0x40] sm:$0xf]
  %v1105 = vld [vmem:[%s1087 + $0x44] sm:$0xf]
  %v1106 = vld [vmem:[%s1087 + $0x48] sm:$0xf]
  %v1107 = vld [vmem:[%s1087 + $0x4c] sm:$0xf]
  %v1108 = vld [vmem:[%s1087 + $0x50] sm:$0xf]
  %v1109 = vld [vmem:[%s1087 + $0x54] sm:$0xf]
  %v1110 = vld [vmem:[%s1087 + $0x58] sm:$0xf]
  %v1111 = vld [vmem:[%s1087 + $0x5c] sm:$0xf]
  %v1112 = vld [vmem:[%s1087 + $0x60] sm:$0xf]
  %v1113 = vld [vmem:[%s1087 + $0x64] sm:$0xf]
  %v1114 = vld [vmem:[%s1087 + $0x68] sm:$0xf]
  %v1115 = vld [vmem:[%s1087 + $0x6c] sm:$0xf]
  %v1144 = vunpack.c.l.b16 %v1088
  %v1145 = vunpack.c.l.b16 %v1089
  %v1146 = vunpack.c.l.b16 %v1090
  %v1147 = vunpack.c.l.b16 %v1091
  %v1148 = vunpack.c.l.b16 %v1092
  %v1149 = vunpack.c.l.b16 %v1093
  %v1150 = vunpack.c.l.b16 %v1094
  %v1151 = vunpack.c.l.b16 %v1095
  %v1152 = vunpack.c.l.b16 %v1096
  %v1153 = vunpack.c.l.b16 %v1097
  %v1154 = vunpack.c.l.b16 %v1098
  %v1155 = vunpack.c.l.b16 %v1099
  %v1156 = vunpack.c.l.b16 %v1100
  %v1157 = vunpack.c.l.b16 %v1101
  %v1158 = vunpack.c.l.b16 %v1102
  %v1159 = vunpack.c.l.b16 %v1103
  %v1160 = vunpack.c.l.b16 %v1104
  %v1161 = vunpack.c.l.b16 %v1105
  %v1162 = vunpack.c.l.b16 %v1106
  %v1163 = vunpack.c.l.b16 %v1107
  %v1164 = vunpack.c.l.b16 %v1108
  %v1165 = vunpack.c.l.b16 %v1109
  %v1166 = vunpack.c.l.b16 %v1110
  %v1167 = vunpack.c.l.b16 %v1111
  %v1168 = vunpack.c.l.b16 %v1112
  %v1169 = vunpack.c.l.b16 %v1113
  %v1170 = vunpack.c.l.b16 %v1114
  %v1171 = vunpack.c.l.b16 %v1115
  %v1172 = vpack.c.b16 %v1145, %v1144
  %v1173 = vpack.c.b16 %v1147, %v1146
  %v1174 = vpack.c.b16 %v1149, %v1148
  %v1175 = vpack.c.b16 %v1151, %v1150
  %v1176 = vpack.c.b16 %v1153, %v1152
  %v1177 = vpack.c.b16 %v1155, %v1154
  %v1178 = vpack.c.b16 %v1157, %v1156
  %v1179 = vpack.c.b16 %v1159, %v1158
  %v1180 = vpack.c.b16 %v1161, %v1160
  %v1181 = vpack.c.b16 %v1163, %v1162
  %v1182 = vpack.c.b16 %v1165, %v1164
  %v1183 = vpack.c.b16 %v1167, %v1166
  %v1184 = vpack.c.b16 %v1169, %v1168
  %v1185 = vpack.c.b16 %v1171, %v1170
  %v1200 = vsel %vm472, %v1079, 0
  %v1202 = vsel %vm472, %v1086, 0
  %1204 = vmatprep.subr.bf16.mxu0 0
  %1205 = vmatpush1.bf16.msra.mxu0 %v1172
  %1206 = vmatprep.subr.bf16.mxu0 0
  %1207 = vmatpush1.bf16.msra.mxu0 %v1173
  %1208 = vmatprep.subr.bf16.mxu0 0
  %1209 = vmatpush1.bf16.msra.mxu0 %v1174
  %1210 = vmatprep.subr.bf16.mxu0 0
  %1211 = vmatpush1.bf16.msra.mxu0 %v1175
  %1212 = vmatprep.subr.bf16.mxu0 0
  %1213 = vmatpush1.bf16.msra.mxu0 %v1176
  %1214 = vmatprep.subr.bf16.mxu0 0
  %1215 = vmatpush1.bf16.msra.mxu0 %v1177
  %1216 = vmatprep.subr.bf16.mxu0 0
  %1217 = vmatpush1.bf16.msra.mxu0 %v1178
  %1218 = vmatprep.subr.bf16.mxu0 0
  %1219 = vmatpush1.bf16.msra.mxu0 %v1179
  %1220 = vmatprep.subr.bf16.mxu0 0
  %1221 = vmatpush1.bf16.msra.mxu0 %v1180
  %1222 = vmatprep.subr.bf16.mxu0 0
  %1223 = vmatpush1.bf16.msra.mxu0 %v1181
  %1224 = vmatprep.subr.bf16.mxu0 0
  %1225 = vmatpush1.bf16.msra.mxu0 %v1182
  %1226 = vmatprep.subr.bf16.mxu0 0
  %1227 = vmatpush1.bf16.msra.mxu0 %v1183
  %1228 = vmatprep.subr.bf16.mxu0 0
  %1229 = vmatpush1.bf16.msra.mxu0 %v1184
  %1230 = vmatprep.subr.bf16.mxu0 0
  %1231 = vmatpush1.bf16.msra.mxu0 %v1185
  %1232 = vmatprep.subr.bf16.mxu0 0
  %1233 = vmatpush1.bf16.msra.mxu0 0
  %1234 = vmatprep.subr.bf16.mxu0 0
  %1235 = vmatpush1.bf16.msra.mxu0 0
  %1236 = vmatprep.mubr.bf16.mxu0 %v1200
  %1237 = vmatmul.mubr.bf16.gmra.mrb[0].mxu0 %v1075
  %v1238 = vpop.f32.mrb[0].mxu0
  %v1239 = vadd.f32 0.0, %v1238
  %v1240 = vpop.f32.mrb[0].mxu0
  %v1241 = vpop.f32.mrb[0].mxu0
  %v1242 = vadd.f32 0.0, %v1241
  %v1243 = vpop.f32.mrb[0].mxu0
  %1244 = vmatprep.mubr.bf16.mxu0 %v1202
  %1245 = vmatmul.mubr.bf16.gmra.mrb[0].mxu0 %v1082
  %v1246 = vpop.f32.mrb[0].mxu0
  %v1247 = vadd.f32 0.0, %v1246
  %v1248 = vpop.f32.mrb[0].mxu0
  %v1249 = vpop.f32.mrb[0].mxu0
  %v1250 = vadd.f32 0.0, %v1249
  %v1251 = vpop.f32.mrb[0].mxu0
  %1252 = vdwg.mxu0
  %v1253 = vadd.f32 %v1061, %v1239
  %v1254 = vadd.f32 %v1062, %v1242
  %v1255 = vadd.f32 %v1063, %v1247
  %v1256 = vadd.f32 %v1064, %v1250
  %v1257 = vrot.slane %v299, 2
  %v1258 = vrot.slane %v301, 3
  %v1259 = vor.u32 %v1257, %v1258
  %v1260 = vrot.slane %v305, 2
  %v1261 = vrot.slane %v307, 3
  %v1262 = vor.u32 %v1260, %v1261
  %v1263 = vrot.slane %v305, 6
  %v1264 = vrot.slane %v307, 7
  %v1265 = vor.u32 %v1263, %v1264
  %v1266 = vrot.slane %v315, 6
  %v1267 = vrot.slane %v318, 7
  %v1268 = vor.u32 %v1266, %v1267
  %v1269 = vrot.slane %v322, 2
  %v1270 = vrot.slane %v324, 3
  %v1271 = vor.u32 %v1269, %v1270
  %v1272 = vrot.slane %v328, 2
  %v1273 = vrot.slane %v330, 3
  %v1274 = vor.u32 %v1272, %v1273
  %v1275 = vrot.slane %v328, 6
  %v1276 = vrot.slane %v330, 7
  %v1277 = vor.u32 %v1275, %v1276
  %v1278 = vrot.slane %v338, 6
  %v1279 = vrot.slane %v341, 7
  %v1280 = vor.u32 %v1278, %v1279
  %v1283 = vsel %vm256, %v1259, %v1265
  %v1287 = vsel %vm256, %v1262, %v1268
  %v1290 = vsel %vm256, %v1271, %v1277
  %v1294 = vsel %vm256, %v1274, %v1280
  %s1295 = scalar_lea.vmem %s1, 560
  %v1296 = vld [vmem:[%s1295] sm:$0xf]
  %v1297 = vld [vmem:[%s1295 + $0x4] sm:$0xf]
  %v1298 = vld [vmem:[%s1295 + $0x8] sm:$0xf]
  %v1299 = vld [vmem:[%s1295 + $0xc] sm:$0xf]
  %v1300 = vld [vmem:[%s1295 + $0x10] sm:$0xf]
  %v1301 = vld [vmem:[%s1295 + $0x14] sm:$0xf]
  %v1302 = vld [vmem:[%s1295 + $0x18] sm:$0xf]
  %v1303 = vld [vmem:[%s1295 + $0x1c] sm:$0xf]
  %v1304 = vld [vmem:[%s1295 + $0x20] sm:$0xf]
  %v1305 = vld [vmem:[%s1295 + $0x24] sm:$0xf]
  %v1306 = vld [vmem:[%s1295 + $0x28] sm:$0xf]
  %v1307 = vld [vmem:[%s1295 + $0x2c] sm:$0xf]
  %v1308 = vld [vmem:[%s1295 + $0x30] sm:$0xf]
  %v1309 = vld [vmem:[%s1295 + $0x34] sm:$0xf]
  %v1310 = vld [vmem:[%s1295 + $0x38] sm:$0xf]
  %v1311 = vld [vmem:[%s1295 + $0x3c] sm:$0xf]
  %v1312 = vld [vmem:[%s1295 + $0x40] sm:$0xf]
  %v1313 = vld [vmem:[%s1295 + $0x44] sm:$0xf]
  %v1314 = vld [vmem:[%s1295 + $0x48] sm:$0xf]
  %v1315 = vld [vmem:[%s1295 + $0x4c] sm:$0xf]
  %v1316 = vld [vmem:[%s1295 + $0x50] sm:$0xf]
  %v1317 = vld [vmem:[%s1295 + $0x54] sm:$0xf]
  %v1318 = vld [vmem:[%s1295 + $0x58] sm:$0xf]
  %v1319 = vld [vmem:[%s1295 + $0x5c] sm:$0xf]
  %v1320 = vld [vmem:[%s1295 + $0x60] sm:$0xf]
  %v1321 = vld [vmem:[%s1295 + $0x64] sm:$0xf]
  %v1322 = vld [vmem:[%s1295 + $0x68] sm:$0xf]
  %v1323 = vld [vmem:[%s1295 + $0x6c] sm:$0xf]
  %v1352 = vunpack.c.l.b16 %v1296
  %v1353 = vunpack.c.l.b16 %v1297
  %v1354 = vunpack.c.l.b16 %v1298
  %v1355 = vunpack.c.l.b16 %v1299
  %v1356 = vunpack.c.l.b16 %v1300
  %v1357 = vunpack.c.l.b16 %v1301
  %v1358 = vunpack.c.l.b16 %v1302
  %v1359 = vunpack.c.l.b16 %v1303
  %v1360 = vunpack.c.l.b16 %v1304
  %v1361 = vunpack.c.l.b16 %v1305
  %v1362 = vunpack.c.l.b16 %v1306
  %v1363 = vunpack.c.l.b16 %v1307
  %v1364 = vunpack.c.l.b16 %v1308
  %v1365 = vunpack.c.l.b16 %v1309
  %v1366 = vunpack.c.l.b16 %v1310
  %v1367 = vunpack.c.l.b16 %v1311
  %v1368 = vunpack.c.l.b16 %v1312
  %v1369 = vunpack.c.l.b16 %v1313
  %v1370 = vunpack.c.l.b16 %v1314
  %v1371 = vunpack.c.l.b16 %v1315
  %v1372 = vunpack.c.l.b16 %v1316
  %v1373 = vunpack.c.l.b16 %v1317
  %v1374 = vunpack.c.l.b16 %v1318
  %v1375 = vunpack.c.l.b16 %v1319
  %v1376 = vunpack.c.l.b16 %v1320
  %v1377 = vunpack.c.l.b16 %v1321
  %v1378 = vunpack.c.l.b16 %v1322
  %v1379 = vunpack.c.l.b16 %v1323
  %v1380 = vpack.c.b16 %v1353, %v1352
  %v1381 = vpack.c.b16 %v1355, %v1354
  %v1382 = vpack.c.b16 %v1357, %v1356
  %v1383 = vpack.c.b16 %v1359, %v1358
  %v1384 = vpack.c.b16 %v1361, %v1360
  %v1385 = vpack.c.b16 %v1363, %v1362
  %v1386 = vpack.c.b16 %v1365, %v1364
  %v1387 = vpack.c.b16 %v1367, %v1366
  %v1388 = vpack.c.b16 %v1369, %v1368
  %v1389 = vpack.c.b16 %v1371, %v1370
  %v1390 = vpack.c.b16 %v1373, %v1372
  %v1391 = vpack.c.b16 %v1375, %v1374
  %v1392 = vpack.c.b16 %v1377, %v1376
  %v1393 = vpack.c.b16 %v1379, %v1378
  %v1408 = vsel %vm472, %v1287, 0
  %v1410 = vsel %vm472, %v1294, 0
  %1412 = vmatprep.subr.bf16.mxu0 0
  %1413 = vmatpush1.bf16.msra.mxu0 %v1380
  %1414 = vmatprep.subr.bf16.mxu0 0
  %1415 = vmatpush1.bf16.msra.mxu0 %v1381
  %1416 = vmatprep.subr.bf16.mxu0 0
  %1417 = vmatpush1.bf16.msra.mxu0 %v1382
  %1418 = vmatprep.subr.bf16.mxu0 0
  %1419 = vmatpush1.bf16.msra.mxu0 %v1383
  %1420 = vmatprep.subr.bf16.mxu0 0
  %1421 = vmatpush1.bf16.msra.mxu0 %v1384
  %1422 = vmatprep.subr.bf16.mxu0 0
  %1423 = vmatpush1.bf16.msra.mxu0 %v1385
  %1424 = vmatprep.subr.bf16.mxu0 0
  %1425 = vmatpush1.bf16.msra.mxu0 %v1386
  %1426 = vmatprep.subr.bf16.mxu0 0
  %1427 = vmatpush1.bf16.msra.mxu0 %v1387
  %1428 = vmatprep.subr.bf16.mxu0 0
  %1429 = vmatpush1.bf16.msra.mxu0 %v1388
  %1430 = vmatprep.subr.bf16.mxu0 0
  %1431 = vmatpush1.bf16.msra.mxu0 %v1389
  %1432 = vmatprep.subr.bf16.mxu0 0
  %1433 = vmatpush1.bf16.msra.mxu0 %v1390
  %1434 = vmatprep.subr.bf16.mxu0 0
  %1435 = vmatpush1.bf16.msra.mxu0 %v1391
  %1436 = vmatprep.subr.bf16.mxu0 0
  %1437 = vmatpush1.bf16.msra.mxu0 %v1392
  %1438 = vmatprep.subr.bf16.mxu0 0
  %1439 = vmatpush1.bf16.msra.mxu0 %v1393
  %1440 = vmatprep.subr.bf16.mxu0 0
  %1441 = vmatpush1.bf16.msra.mxu0 0
  %1442 = vmatprep.subr.bf16.mxu0 0
  %1443 = vmatpush1.bf16.msra.mxu0 0
  %1444 = vmatprep.mubr.bf16.mxu0 %v1408
  %1445 = vmatmul.mubr.bf16.gmra.mrb[0].mxu0 %v1283
  %v1446 = vpop.f32.mrb[0].mxu0
  %v1447 = vadd.f32 0.0, %v1446
  %v1448 = vpop.f32.mrb[0].mxu0
  %v1449 = vpop.f32.mrb[0].mxu0
  %v1450 = vadd.f32 0.0, %v1449
  %v1451 = vpop.f32.mrb[0].mxu0
  %1452 = vmatprep.mubr.bf16.mxu0 %v1410
  %1453 = vmatmul.mubr.bf16.gmra.mrb[0].mxu0 %v1290
  %v1454 = vpop.f32.mrb[0].mxu0
  %v1455 = vadd.f32 0.0, %v1454
  %v1456 = vpop.f32.mrb[0].mxu0
  %v1457 = vpop.f32.mrb[0].mxu0
  %v1458 = vadd.f32 0.0, %v1457
  %v1459 = vpop.f32.mrb[0].mxu0
  %1460 = vdwg.mxu0
  %v1461 = vadd.f32 %v1253, %v1447
  %v1462 = vadd.f32 %v1254, %v1450
  %v1463 = vadd.f32 %v1255, %v1455
  %v1464 = vadd.f32 %v1256, %v1458
  %v1465 = vrot.slane %v87, 3
  %v1466 = vrot.slane %v88, 3
  %v1467 = vrot.slane %v88, 7
  %v1468 = vrot.slane %v89, 7
  %v1469 = vrot.slane %v201, 3
  %v1470 = vrot.slane %v202, 3
  %v1471 = vrot.slane %v202, 7
  %v1472 = vrot.slane %v203, 7
  %v1475 = vsel %vm256, %v1465, %v1467
  %v1479 = vsel %vm256, %v1466, %v1468
  %v1482 = vsel %vm256, %v1469, %v1471
  %v1486 = vsel %vm256, %v1470, %v1472
  %s1487 = scalar_lea.vmem %s1, 672
  %v1488 = vld [vmem:[%s1487] sm:$0xf]
  %v1489 = vld [vmem:[%s1487 + $0x4] sm:$0xf]
  %v1490 = vld [vmem:[%s1487 + $0x8] sm:$0xf]
  %v1491 = vld [vmem:[%s1487 + $0xc] sm:$0xf]
  %v1492 = vld [vmem:[%s1487 + $0x10] sm:$0xf]
  %v1493 = vld [vmem:[%s1487 + $0x14] sm:$0xf]
  %v1494 = vld [vmem:[%s1487 + $0x18] sm:$0xf]
  %v1495 = vld [vmem:[%s1487 + $0x1c] sm:$0xf]
  %v1496 = vld [vmem:[%s1487 + $0x20] sm:$0xf]
  %v1497 = vld [vmem:[%s1487 + $0x24] sm:$0xf]
  %v1498 = vld [vmem:[%s1487 + $0x28] sm:$0xf]
  %v1499 = vld [vmem:[%s1487 + $0x2c] sm:$0xf]
  %v1500 = vld [vmem:[%s1487 + $0x30] sm:$0xf]
  %v1501 = vld [vmem:[%s1487 + $0x34] sm:$0xf]
  %v1502 = vld [vmem:[%s1487 + $0x38] sm:$0xf]
  %v1503 = vld [vmem:[%s1487 + $0x3c] sm:$0xf]
  %v1504 = vld [vmem:[%s1487 + $0x40] sm:$0xf]
  %v1505 = vld [vmem:[%s1487 + $0x44] sm:$0xf]
  %v1506 = vld [vmem:[%s1487 + $0x48] sm:$0xf]
  %v1507 = vld [vmem:[%s1487 + $0x4c] sm:$0xf]
  %v1508 = vld [vmem:[%s1487 + $0x50] sm:$0xf]
  %v1509 = vld [vmem:[%s1487 + $0x54] sm:$0xf]
  %v1510 = vld [vmem:[%s1487 + $0x58] sm:$0xf]
  %v1511 = vld [vmem:[%s1487 + $0x5c] sm:$0xf]
  %v1512 = vld [vmem:[%s1487 + $0x60] sm:$0xf]
  %v1513 = vld [vmem:[%s1487 + $0x64] sm:$0xf]
  %v1514 = vld [vmem:[%s1487 + $0x68] sm:$0xf]
  %v1515 = vld [vmem:[%s1487 + $0x6c] sm:$0xf]
  %v1544 = vunpack.c.l.b16 %v1488
  %v1545 = vunpack.c.l.b16 %v1489
  %v1546 = vunpack.c.l.b16 %v1490
  %v1547 = vunpack.c.l.b16 %v1491
  %v1548 = vunpack.c.l.b16 %v1492
  %v1549 = vunpack.c.l.b16 %v1493
  %v1550 = vunpack.c.l.b16 %v1494
  %v1551 = vunpack.c.l.b16 %v1495
  %v1552 = vunpack.c.l.b16 %v1496
  %v1553 = vunpack.c.l.b16 %v1497
  %v1554 = vunpack.c.l.b16 %v1498
  %v1555 = vunpack.c.l.b16 %v1499
  %v1556 = vunpack.c.l.b16 %v1500
  %v1557 = vunpack.c.l.b16 %v1501
  %v1558 = vunpack.c.l.b16 %v1502
  %v1559 = vunpack.c.l.b16 %v1503
  %v1560 = vunpack.c.l.b16 %v1504
  %v1561 = vunpack.c.l.b16 %v1505
  %v1562 = vunpack.c.l.b16 %v1506
  %v1563 = vunpack.c.l.b16 %v1507
  %v1564 = vunpack.c.l.b16 %v1508
  %v1565 = vunpack.c.l.b16 %v1509
  %v1566 = vunpack.c.l.b16 %v1510
  %v1567 = vunpack.c.l.b16 %v1511
  %v1568 = vunpack.c.l.b16 %v1512
  %v1569 = vunpack.c.l.b16 %v1513
  %v1570 = vunpack.c.l.b16 %v1514
  %v1571 = vunpack.c.l.b16 %v1515
  %v1572 = vpack.c.b16 %v1545, %v1544
  %v1573 = vpack.c.b16 %v1547, %v1546
  %v1574 = vpack.c.b16 %v1549, %v1548
  %v1575 = vpack.c.b16 %v1551, %v1550
  %v1576 = vpack.c.b16 %v1553, %v1552
  %v1577 = vpack.c.b16 %v1555, %v1554
  %v1578 = vpack.c.b16 %v1557, %v1556
  %v1579 = vpack.c.b16 %v1559, %v1558
  %v1580 = vpack.c.b16 %v1561, %v1560
  %v1581 = vpack.c.b16 %v1563, %v1562
  %v1582 = vpack.c.b16 %v1565, %v1564
  %v1583 = vpack.c.b16 %v1567, %v1566
  %v1584 = vpack.c.b16 %v1569, %v1568
  %v1585 = vpack.c.b16 %v1571, %v1570
  %v1600 = vsel %vm472, %v1479, 0
  %v1602 = vsel %vm472, %v1486, 0
  %1604 = vmatprep.subr.bf16.mxu0 0
  %1605 = vmatpush1.bf16.msra.mxu0 %v1572
  %1606 = vmatprep.subr.bf16.mxu0 0
  %1607 = vmatpush1.bf16.msra.mxu0 %v1573
  %1608 = vmatprep.subr.bf16.mxu0 0
  %1609 = vmatpush1.bf16.msra.mxu0 %v1574
  %1610 = vmatprep.subr.bf16.mxu0 0
  %1611 = vmatpush1.bf16.msra.mxu0 %v1575
  %1612 = vmatprep.subr.bf16.mxu0 0
  %1613 = vmatpush1.bf16.msra.mxu0 %v1576
  %1614 = vmatprep.subr.bf16.mxu0 0
  %1615 = vmatpush1.bf16.msra.mxu0 %v1577
  %1616 = vmatprep.subr.bf16.mxu0 0
  %1617 = vmatpush1.bf16.msra.mxu0 %v1578
  %1618 = vmatprep.subr.bf16.mxu0 0
  %1619 = vmatpush1.bf16.msra.mxu0 %v1579
  %1620 = vmatprep.subr.bf16.mxu0 0
  %1621 = vmatpush1.bf16.msra.mxu0 %v1580
  %1622 = vmatprep.subr.bf16.mxu0 0
  %1623 = vmatpush1.bf16.msra.mxu0 %v1581
  %1624 = vmatprep.subr.bf16.mxu0 0
  %1625 = vmatpush1.bf16.msra.mxu0 %v1582
  %1626 = vmatprep.subr.bf16.mxu0 0
  %1627 = vmatpush1.bf16.msra.mxu0 %v1583
  %1628 = vmatprep.subr.bf16.mxu0 0
  %1629 = vmatpush1.bf16.msra.mxu0 %v1584
  %1630 = vmatprep.subr.bf16.mxu0 0
  %1631 = vmatpush1.bf16.msra.mxu0 %v1585
  %1632 = vmatprep.subr.bf16.mxu0 0
  %1633 = vmatpush1.bf16.msra.mxu0 0
  %1634 = vmatprep.subr.bf16.mxu0 0
  %1635 = vmatpush1.bf16.msra.mxu0 0
  %1636 = vmatprep.mubr.bf16.mxu0 %v1600
  %1637 = vmatmul.mubr.bf16.gmra.mrb[0].mxu0 %v1475
  %v1638 = vpop.f32.mrb[0].mxu0
  %v1639 = vadd.f32 0.0, %v1638
  %v1640 = vpop.f32.mrb[0].mxu0
  %v1641 = vpop.f32.mrb[0].mxu0
  %v1642 = vadd.f32 0.0, %v1641
  %v1643 = vpop.f32.mrb[0].mxu0
  %1644 = vmatprep.mubr.bf16.mxu0 %v1602
  %1645 = vmatmul.mubr.bf16.gmra.mrb[0].mxu0 %v1482
  %v1646 = vpop.f32.mrb[0].mxu0
  %v1647 = vadd.f32 0.0, %v1646
  %v1648 = vpop.f32.mrb[0].mxu0
  %v1649 = vpop.f32.mrb[0].mxu0
  %v1650 = vadd.f32 0.0, %v1649
  %v1651 = vpop.f32.mrb[0].mxu0
  %1652 = vdwg.mxu0
  %v1653 = vadd.f32 %v1461, %v1639
  %v1654 = vadd.f32 %v1462, %v1642
  %v1655 = vadd.f32 %v1463, %v1647
  %v1656 = vadd.f32 %v1464, %v1650
  %v1659 = vrot.slane %v132, 4
  %v1660 = vrot.slane %v133, 4
  %v1663 = vrot.slane %v246, 4
  %v1664 = vrot.slane %v247, 4
  %v1667 = vsel %vm256, %v131, %v1659
  %v1671 = vsel %vm256, %v132, %v1660
  %v1674 = vsel %vm256, %v245, %v1663
  %v1678 = vsel %vm256, %v246, %v1664
  %s1679 = scalar_lea.vmem %s1, 784
  %v1680 = vld [vmem:[%s1679] sm:$0xf]
  %v1681 = vld [vmem:[%s1679 + $0x4] sm:$0xf]
  %v1682 = vld [vmem:[%s1679 + $0x8] sm:$0xf]
  %v1683 = vld [vmem:[%s1679 + $0xc] sm:$0xf]
  %v1684 = vld [vmem:[%s1679 + $0x10] sm:$0xf]
  %v1685 = vld [vmem:[%s1679 + $0x14] sm:$0xf]
  %v1686 = vld [vmem:[%s1679 + $0x18] sm:$0xf]
  %v1687 = vld [vmem:[%s1679 + $0x1c] sm:$0xf]
  %v1688 = vld [vmem:[%s1679 + $0x20] sm:$0xf]
  %v1689 = vld [vmem:[%s1679 + $0x24] sm:$0xf]
  %v1690 = vld [vmem:[%s1679 + $0x28] sm:$0xf]
  %v1691 = vld [vmem:[%s1679 + $0x2c] sm:$0xf]
  %v1692 = vld [vmem:[%s1679 + $0x30] sm:$0xf]
  %v1693 = vld [vmem:[%s1679 + $0x34] sm:$0xf]
  %v1694 = vld [vmem:[%s1679 + $0x38] sm:$0xf]
  %v1695 = vld [vmem:[%s1679 + $0x3c] sm:$0xf]
  %v1696 = vld [vmem:[%s1679 + $0x40] sm:$0xf]
  %v1697 = vld [vmem:[%s1679 + $0x44] sm:$0xf]
  %v1698 = vld [vmem:[%s1679 + $0x48] sm:$0xf]
  %v1699 = vld [vmem:[%s1679 + $0x4c] sm:$0xf]
  %v1700 = vld [vmem:[%s1679 + $0x50] sm:$0xf]
  %v1701 = vld [vmem:[%s1679 + $0x54] sm:$0xf]
  %v1702 = vld [vmem:[%s1679 + $0x58] sm:$0xf]
  %v1703 = vld [vmem:[%s1679 + $0x5c] sm:$0xf]
  %v1704 = vld [vmem:[%s1679 + $0x60] sm:$0xf]
  %v1705 = vld [vmem:[%s1679 + $0x64] sm:$0xf]
  %v1706 = vld [vmem:[%s1679 + $0x68] sm:$0xf]
  %v1707 = vld [vmem:[%s1679 + $0x6c] sm:$0xf]
  %v1736 = vunpack.c.l.b16 %v1680
  %v1737 = vunpack.c.l.b16 %v1681
  %v1738 = vunpack.c.l.b16 %v1682
  %v1739 = vunpack.c.l.b16 %v1683
  %v1740 = vunpack.c.l.b16 %v1684
  %v1741 = vunpack.c.l.b16 %v1685
  %v1742 = vunpack.c.l.b16 %v1686
  %v1743 = vunpack.c.l.b16 %v1687
  %v1744 = vunpack.c.l.b16 %v1688
  %v1745 = vunpack.c.l.b16 %v1689
  %v1746 = vunpack.c.l.b16 %v1690
  %v1747 = vunpack.c.l.b16 %v1691
  %v1748 = vunpack.c.l.b16 %v1692
  %v1749 = vunpack.c.l.b16 %v1693
  %v1750 = vunpack.c.l.b16 %v1694
  %v1751 = vunpack.c.l.b16 %v1695
  %v1752 = vunpack.c.l.b16 %v1696
  %v1753 = vunpack.c.l.b16 %v1697
  %v1754 = vunpack.c.l.b16 %v1698
  %v1755 = vunpack.c.l.b16 %v1699
  %v1756 = vunpack.c.l.b16 %v1700
  %v1757 = vunpack.c.l.b16 %v1701
  %v1758 = vunpack.c.l.b16 %v1702
  %v1759 = vunpack.c.l.b16 %v1703
  %v1760 = vunpack.c.l.b16 %v1704
  %v1761 = vunpack.c.l.b16 %v1705
  %v1762 = vunpack.c.l.b16 %v1706
  %v1763 = vunpack.c.l.b16 %v1707
  %v1764 = vpack.c.b16 %v1737, %v1736
  %v1765 = vpack.c.b16 %v1739, %v1738
  %v1766 = vpack.c.b16 %v1741, %v1740
  %v1767 = vpack.c.b16 %v1743, %v1742
  %v1768 = vpack.c.b16 %v1745, %v1744
  %v1769 = vpack.c.b16 %v1747, %v1746
  %v1770 = vpack.c.b16 %v1749, %v1748
  %v1771 = vpack.c.b16 %v1751, %v1750
  %v1772 = vpack.c.b16 %v1753, %v1752
  %v1773 = vpack.c.b16 %v1755, %v1754
  %v1774 = vpack.c.b16 %v1757, %v1756
  %v1775 = vpack.c.b16 %v1759, %v1758
  %v1776 = vpack.c.b16 %v1761, %v1760
  %v1777 = vpack.c.b16 %v1763, %v1762
  %v1792 = vsel %vm472, %v1671, 0
  %v1794 = vsel %vm472, %v1678, 0
  %1796 = vmatprep.subr.bf16.mxu0 0
  %1797 = vmatpush1.bf16.msra.mxu0 %v1764
  %1798 = vmatprep.subr.bf16.mxu0 0
  %1799 = vmatpush1.bf16.msra.mxu0 %v1765
  %1800 = vmatprep.subr.bf16.mxu0 0
  %1801 = vmatpush1.bf16.msra.mxu0 %v1766
  %1802 = vmatprep.subr.bf16.mxu0 0
  %1803 = vmatpush1.bf16.msra.mxu0 %v1767
  %1804 = vmatprep.subr.bf16.mxu0 0
  %1805 = vmatpush1.bf16.msra.mxu0 %v1768
  %1806 = vmatprep.subr.bf16.mxu0 0
  %1807 = vmatpush1.bf16.msra.mxu0 %v1769
  %1808 = vmatprep.subr.bf16.mxu0 0
  %1809 = vmatpush1.bf16.msra.mxu0 %v1770
  %1810 = vmatprep.subr.bf16.mxu0 0
  %1811 = vmatpush1.bf16.msra.mxu0 %v1771
  %1812 = vmatprep.subr.bf16.mxu0 0
  %1813 = vmatpush1.bf16.msra.mxu0 %v1772
  %1814 = vmatprep.subr.bf16.mxu0 0
  %1815 = vmatpush1.bf16.msra.mxu0 %v1773
  %1816 = vmatprep.subr.bf16.mxu0 0
  %1817 = vmatpush1.bf16.msra.mxu0 %v1774
  %1818 = vmatprep.subr.bf16.mxu0 0
  %1819 = vmatpush1.bf16.msra.mxu0 %v1775
  %1820 = vmatprep.subr.bf16.mxu0 0
  %1821 = vmatpush1.bf16.msra.mxu0 %v1776
  %1822 = vmatprep.subr.bf16.mxu0 0
  %1823 = vmatpush1.bf16.msra.mxu0 %v1777
  %1824 = vmatprep.subr.bf16.mxu0 0
  %1825 = vmatpush1.bf16.msra.mxu0 0
  %1826 = vmatprep.subr.bf16.mxu0 0
  %1827 = vmatpush1.bf16.msra.mxu0 0
  %1828 = vmatprep.mubr.bf16.mxu0 %v1792
  %1829 = vmatmul.mubr.bf16.gmra.mrb[0].mxu0 %v1667
  %v1830 = vpop.f32.mrb[0].mxu0
  %v1831 = vadd.f32 0.0, %v1830
  %v1832 = vpop.f32.mrb[0].mxu0
  %v1833 = vpop.f32.mrb[0].mxu0
  %v1834 = vadd.f32 0.0, %v1833
  %v1835 = vpop.f32.mrb[0].mxu0
  %1836 = vmatprep.mubr.bf16.mxu0 %v1794
  %1837 = vmatmul.mubr.bf16.gmra.mrb[0].mxu0 %v1674
  %v1838 = vpop.f32.mrb[0].mxu0
  %v1839 = vadd.f32 0.0, %v1838
  %v1840 = vpop.f32.mrb[0].mxu0
  %v1841 = vpop.f32.mrb[0].mxu0
  %v1842 = vadd.f32 0.0, %v1841
  %v1843 = vpop.f32.mrb[0].mxu0
  %1844 = vdwg.mxu0
  %v1845 = vadd.f32 %v1653, %v1831
  %v1846 = vadd.f32 %v1654, %v1834
  %v1847 = vadd.f32 %v1655, %v1839
  %v1848 = vadd.f32 %v1656, %v1842
  %v1849 = vshrl.u32 %v131, 16
  %v1851 = vshll.u32 %v131, 16
  %v1853 = vrot.slane %v1851, 1
  %v1854 = vor.u32 %v1849, %v1853
  %v1855 = vshrl.u32 %v132, 16
  %v1857 = vshll.u32 %v132, 16
  %v1859 = vrot.slane %v1857, 1
  %v1860 = vor.u32 %v1855, %v1859
  %v1861 = vrot.slane %v1855, 4
  %v1862 = vrot.slane %v1857, 5
  %v1863 = vor.u32 %v1861, %v1862
  %v1865 = vshrl.u32 %v133, 16
  %v1867 = vrot.slane %v1865, 4
  %v1868 = vshll.u32 %v133, 16
  %v1870 = vrot.slane %v1868, 5
  %v1871 = vor.u32 %v1867, %v1870
  %v1872 = vshrl.u32 %v245, 16
  %v1874 = vshll.u32 %v245, 16
  %v1876 = vrot.slane %v1874, 1
  %v1877 = vor.u32 %v1872, %v1876
  %v1878 = vshrl.u32 %v246, 16
  %v1880 = vshll.u32 %v246, 16
  %v1882 = vrot.slane %v1880, 1
  %v1883 = vor.u32 %v1878, %v1882
  %v1884 = vrot.slane %v1878, 4
  %v1885 = vrot.slane %v1880, 5
  %v1886 = vor.u32 %v1884, %v1885
  %v1888 = vshrl.u32 %v247, 16
  %v1890 = vrot.slane %v1888, 4
  %v1891 = vshll.u32 %v247, 16
  %v1893 = vrot.slane %v1891, 5
  %v1894 = vor.u32 %v1890, %v1893
  %v1897 = vsel %vm256, %v1854, %v1863
  %v1901 = vsel %vm256, %v1860, %v1871
  %v1904 = vsel %vm256, %v1877, %v1886
  %v1908 = vsel %vm256, %v1883, %v1894
  %s1909 = scalar_lea.vmem %s1, 896
  %v1910 = vld [vmem:[%s1909] sm:$0xf]
  %v1911 = vld [vmem:[%s1909 + $0x4] sm:$0xf]
  %v1912 = vld [vmem:[%s1909 + $0x8] sm:$0xf]
  %v1913 = vld [vmem:[%s1909 + $0xc] sm:$0xf]
  %v1914 = vld [vmem:[%s1909 + $0x10] sm:$0xf]
  %v1915 = vld [vmem:[%s1909 + $0x14] sm:$0xf]
  %v1916 = vld [vmem:[%s1909 + $0x18] sm:$0xf]
  %v1917 = vld [vmem:[%s1909 + $0x1c] sm:$0xf]
  %v1918 = vld [vmem:[%s1909 + $0x20] sm:$0xf]
  %v1919 = vld [vmem:[%s1909 + $0x24] sm:$0xf]
  %v1920 = vld [vmem:[%s1909 + $0x28] sm:$0xf]
  %v1921 = vld [vmem:[%s1909 + $0x2c] sm:$0xf]
  %v1922 = vld [vmem:[%s1909 + $0x30] sm:$0xf]
  %v1923 = vld [vmem:[%s1909 + $0x34] sm:$0xf]
  %v1924 = vld [vmem:[%s1909 + $0x38] sm:$0xf]
  %v1925 = vld [vmem:[%s1909 + $0x3c] sm:$0xf]
  %v1926 = vld [vmem:[%s1909 + $0x40] sm:$0xf]
  %v1927 = vld [vmem:[%s1909 + $0x44] sm:$0xf]
  %v1928 = vld [vmem:[%s1909 + $0x48] sm:$0xf]
  %v1929 = vld [vmem:[%s1909 + $0x4c] sm:$0xf]
  %v1930 = vld [vmem:[%s1909 + $0x50] sm:$0xf]
  %v1931 = vld [vmem:[%s1909 + $0x54] sm:$0xf]
  %v1932 = vld [vmem:[%s1909 + $0x58] sm:$0xf]
  %v1933 = vld [vmem:[%s1909 + $0x5c] sm:$0xf]
  %v1934 = vld [vmem:[%s1909 + $0x60] sm:$0xf]
  %v1935 = vld [vmem:[%s1909 + $0x64] sm:$0xf]
  %v1936 = vld [vmem:[%s1909 + $0x68] sm:$0xf]
  %v1937 = vld [vmem:[%s1909 + $0x6c] sm:$0xf]
  %v1966 = vunpack.c.l.b16 %v1910
  %v1967 = vunpack.c.l.b16 %v1911
  %v1968 = vunpack.c.l.b16 %v1912
  %v1969 = vunpack.c.l.b16 %v1913
  %v1970 = vunpack.c.l.b16 %v1914
  %v1971 = vunpack.c.l.b16 %v1915
  %v1972 = vunpack.c.l.b16 %v1916
  %v1973 = vunpack.c.l.b16 %v1917
  %v1974 = vunpack.c.l.b16 %v1918
  %v1975 = vunpack.c.l.b16 %v1919
  %v1976 = vunpack.c.l.b16 %v1920
  %v1977 = vunpack.c.l.b16 %v1921
  %v1978 = vunpack.c.l.b16 %v1922
  %v1979 = vunpack.c.l.b16 %v1923
  %v1980 = vunpack.c.l.b16 %v1924
  %v1981 = vunpack.c.l.b16 %v1925
  %v1982 = vunpack.c.l.b16 %v1926
  %v1983 = vunpack.c.l.b16 %v1927
  %v1984 = vunpack.c.l.b16 %v1928
  %v1985 = vunpack.c.l.b16 %v1929
  %v1986 = vunpack.c.l.b16 %v1930
  %v1987 = vunpack.c.l.b16 %v1931
  %v1988 = vunpack.c.l.b16 %v1932
  %v1989 = vunpack.c.l.b16 %v1933
  %v1990 = vunpack.c.l.b16 %v1934
  %v1991 = vunpack.c.l.b16 %v1935
  %v1992 = vunpack.c.l.b16 %v1936
  %v1993 = vunpack.c.l.b16 %v1937
  %v1994 = vpack.c.b16 %v1967, %v1966
  %v1995 = vpack.c.b16 %v1969, %v1968
  %v1996 = vpack.c.b16 %v1971, %v1970
  %v1997 = vpack.c.b16 %v1973, %v1972
  %v1998 = vpack.c.b16 %v1975, %v1974
  %v1999 = vpack.c.b16 %v1977, %v1976
  %v2000 = vpack.c.b16 %v1979, %v1978
  %v2001 = vpack.c.b16 %v1981, %v1980
  %v2002 = vpack.c.b16 %v1983, %v1982
  %v2003 = vpack.c.b16 %v1985, %v1984
  %v2004 = vpack.c.b16 %v1987, %v1986
  %v2005 = vpack.c.b16 %v1989, %v1988
  %v2006 = vpack.c.b16 %v1991, %v1990
  %v2007 = vpack.c.b16 %v1993, %v1992
  %v2022 = vsel %vm472, %v1901, 0
  %v2024 = vsel %vm472, %v1908, 0
  %2026 = vmatprep.subr.bf16.mxu0 0
  %2027 = vmatpush1.bf16.msra.mxu0 %v1994
  %2028 = vmatprep.subr.bf16.mxu0 0
  %2029 = vmatpush1.bf16.msra.mxu0 %v1995
  %2030 = vmatprep.subr.bf16.mxu0 0
  %2031 = vmatpush1.bf16.msra.mxu0 %v1996
  %2032 = vmatprep.subr.bf16.mxu0 0
  %2033 = vmatpush1.bf16.msra.mxu0 %v1997
  %2034 = vmatprep.subr.bf16.mxu0 0
  %2035 = vmatpush1.bf16.msra.mxu0 %v1998
  %2036 = vmatprep.subr.bf16.mxu0 0
  %2037 = vmatpush1.bf16.msra.mxu0 %v1999
  %2038 = vmatprep.subr.bf16.mxu0 0
  %2039 = vmatpush1.bf16.msra.mxu0 %v2000
  %2040 = vmatprep.subr.bf16.mxu0 0
  %2041 = vmatpush1.bf16.msra.mxu0 %v2001
  %2042 = vmatprep.subr.bf16.mxu0 0
  %2043 = vmatpush1.bf16.msra.mxu0 %v2002
  %2044 = vmatprep.subr.bf16.mxu0 0
  %2045 = vmatpush1.bf16.msra.mxu0 %v2003
  %2046 = vmatprep.subr.bf16.mxu0 0
  %2047 = vmatpush1.bf16.msra.mxu0 %v2004
  %2048 = vmatprep.subr.bf16.mxu0 0
  %2049 = vmatpush1.bf16.msra.mxu0 %v2005
  %2050 = vmatprep.subr.bf16.mxu0 0
  %2051 = vmatpush1.bf16.msra.mxu0 %v2006
  %2052 = vmatprep.subr.bf16.mxu0 0
  %2053 = vmatpush1.bf16.msra.mxu0 %v2007
  %2054 = vmatprep.subr.bf16.mxu0 0
  %2055 = vmatpush1.bf16.msra.mxu0 0
  %2056 = vmatprep.subr.bf16.mxu0 0
  %2057 = vmatpush1.bf16.msra.mxu0 0
  %2058 = vmatprep.mubr.bf16.mxu0 %v2022
  %2059 = vmatmul.mubr.bf16.gmra.mrb[0].mxu0 %v1897
  %v2060 = vpop.f32.mrb[0].mxu0
  %v2061 = vadd.f32 0.0, %v2060
  %v2062 = vpop.f32.mrb[0].mxu0
  %v2063 = vpop.f32.mrb[0].mxu0
  %v2064 = vadd.f32 0.0, %v2063
  %v2065 = vpop.f32.mrb[0].mxu0
  %2066 = vmatprep.mubr.bf16.mxu0 %v2024
  %2067 = vmatmul.mubr.bf16.gmra.mrb[0].mxu0 %v1904
  %v2068 = vpop.f32.mrb[0].mxu0
  %v2069 = vadd.f32 0.0, %v2068
  %v2070 = vpop.f32.mrb[0].mxu0
  %v2071 = vpop.f32.mrb[0].mxu0
  %v2072 = vadd.f32 0.0, %v2071
  %v2073 = vpop.f32.mrb[0].mxu0
  %2074 = vdwg.mxu0
  %v2075 = vadd.f32 %v1845, %v2061
  %v2076 = vadd.f32 %v1846, %v2064
  %v2077 = vadd.f32 %v1847, %v2069
  %v2078 = vadd.f32 %v1848, %v2072
  %v2080 = vrot.slane %v131, 1
  %v2081 = vrot.slane %v132, 1
  %v2082 = vrot.slane %v132, 5
  %v2083 = vrot.slane %v133, 5
  %v2085 = vrot.slane %v245, 1
  %v2086 = vrot.slane %v246, 1
  %v2087 = vrot.slane %v246, 5
  %v2088 = vrot.slane %v247, 5
  %v2091 = vsel %vm256, %v2080, %v2082
  %v2095 = vsel %vm256, %v2081, %v2083
  %v2098 = vsel %vm256, %v2085, %v2087
  %v2102 = vsel %vm256, %v2086, %v2088
  %s2103 = scalar_lea.vmem %s1, 1008
  %v2104 = vld [vmem:[%s2103] sm:$0xf]
  %v2105 = vld [vmem:[%s2103 + $0x4] sm:$0xf]
  %v2106 = vld [vmem:[%s2103 + $0x8] sm:$0xf]
  %v2107 = vld [vmem:[%s2103 + $0xc] sm:$0xf]
  %v2108 = vld [vmem:[%s2103 + $0x10] sm:$0xf]
  %v2109 = vld [vmem:[%s2103 + $0x14] sm:$0xf]
  %v2110 = vld [vmem:[%s2103 + $0x18] sm:$0xf]
  %v2111 = vld [vmem:[%s2103 + $0x1c] sm:$0xf]
  %v2112 = vld [vmem:[%s2103 + $0x20] sm:$0xf]
  %v2113 = vld [vmem:[%s2103 + $0x24] sm:$0xf]
  %v2114 = vld [vmem:[%s2103 + $0x28] sm:$0xf]
  %v2115 = vld [vmem:[%s2103 + $0x2c] sm:$0xf]
  %v2116 = vld [vmem:[%s2103 + $0x30] sm:$0xf]
  %v2117 = vld [vmem:[%s2103 + $0x34] sm:$0xf]
  %v2118 = vld [vmem:[%s2103 + $0x38] sm:$0xf]
  %v2119 = vld [vmem:[%s2103 + $0x3c] sm:$0xf]
  %v2120 = vld [vmem:[%s2103 + $0x40] sm:$0xf]
  %v2121 = vld [vmem:[%s2103 + $0x44] sm:$0xf]
  %v2122 = vld [vmem:[%s2103 + $0x48] sm:$0xf]
  %v2123 = vld [vmem:[%s2103 + $0x4c] sm:$0xf]
  %v2124 = vld [vmem:[%s2103 + $0x50] sm:$0xf]
  %v2125 = vld [vmem:[%s2103 + $0x54] sm:$0xf]
  %v2126 = vld [vmem:[%s2103 + $0x58] sm:$0xf]
  %v2127 = vld [vmem:[%s2103 + $0x5c] sm:$0xf]
  %v2128 = vld [vmem:[%s2103 + $0x60] sm:$0xf]
  %v2129 = vld [vmem:[%s2103 + $0x64] sm:$0xf]
  %v2130 = vld [vmem:[%s2103 + $0x68] sm:$0xf]
  %v2131 = vld [vmem:[%s2103 + $0x6c] sm:$0xf]
  %v2160 = vunpack.c.l.b16 %v2104
  %v2161 = vunpack.c.l.b16 %v2105
  %v2162 = vunpack.c.l.b16 %v2106
  %v2163 = vunpack.c.l.b16 %v2107
  %v2164 = vunpack.c.l.b16 %v2108
  %v2165 = vunpack.c.l.b16 %v2109
  %v2166 = vunpack.c.l.b16 %v2110
  %v2167 = vunpack.c.l.b16 %v2111
  %v2168 = vunpack.c.l.b16 %v2112
  %v2169 = vunpack.c.l.b16 %v2113
  %v2170 = vunpack.c.l.b16 %v2114
  %v2171 = vunpack.c.l.b16 %v2115
  %v2172 = vunpack.c.l.b16 %v2116
  %v2173 = vunpack.c.l.b16 %v2117
  %v2174 = vunpack.c.l.b16 %v2118
  %v2175 = vunpack.c.l.b16 %v2119
  %v2176 = vunpack.c.l.b16 %v2120
  %v2177 = vunpack.c.l.b16 %v2121
  %v2178 = vunpack.c.l.b16 %v2122
  %v2179 = vunpack.c.l.b16 %v2123
  %v2180 = vunpack.c.l.b16 %v2124
  %v2181 = vunpack.c.l.b16 %v2125
  %v2182 = vunpack.c.l.b16 %v2126
  %v2183 = vunpack.c.l.b16 %v2127
  %v2184 = vunpack.c.l.b16 %v2128
  %v2185 = vunpack.c.l.b16 %v2129
  %v2186 = vunpack.c.l.b16 %v2130
  %v2187 = vunpack.c.l.b16 %v2131
  %v2188 = vpack.c.b16 %v2161, %v2160
  %v2189 = vpack.c.b16 %v2163, %v2162
  %v2190 = vpack.c.b16 %v2165, %v2164
  %v2191 = vpack.c.b16 %v2167, %v2166
  %v2192 = vpack.c.b16 %v2169, %v2168
  %v2193 = vpack.c.b16 %v2171, %v2170
  %v2194 = vpack.c.b16 %v2173, %v2172
  %v2195 = vpack.c.b16 %v2175, %v2174
  %v2196 = vpack.c.b16 %v2177, %v2176
  %v2197 = vpack.c.b16 %v2179, %v2178
  %v2198 = vpack.c.b16 %v2181, %v2180
  %v2199 = vpack.c.b16 %v2183, %v2182
  %v2200 = vpack.c.b16 %v2185, %v2184
  %v2201 = vpack.c.b16 %v2187, %v2186
  %v2216 = vsel %vm472, %v2095, 0
  %v2218 = vsel %vm472, %v2102, 0
  %2220 = vmatprep.subr.bf16.mxu0 0
  %2221 = vmatpush1.bf16.msra.mxu0 %v2188
  %2222 = vmatprep.subr.bf16.mxu0 0
  %2223 = vmatpush1.bf16.msra.mxu0 %v2189
  %2224 = vmatprep.subr.bf16.mxu0 0
  %2225 = vmatpush1.bf16.msra.mxu0 %v2190
  %2226 = vmatprep.subr.bf16.mxu0 0
  %2227 = vmatpush1.bf16.msra.mxu0 %v2191
  %2228 = vmatprep.subr.bf16.mxu0 0
  %2229 = vmatpush1.bf16.msra.mxu0 %v2192
  %2230 = vmatprep.subr.bf16.mxu0 0
  %2231 = vmatpush1.bf16.msra.mxu0 %v2193
  %2232 = vmatprep.subr.bf16.mxu0 0
  %2233 = vmatpush1.bf16.msra.mxu0 %v2194
  %2234 = vmatprep.subr.bf16.mxu0 0
  %2235 = vmatpush1.bf16.msra.mxu0 %v2195
  %2236 = vmatprep.subr.bf16.mxu0 0
  %2237 = vmatpush1.bf16.msra.mxu0 %v2196
  %2238 = vmatprep.subr.bf16.mxu0 0
  %2239 = vmatpush1.bf16.msra.mxu0 %v2197
  %2240 = vmatprep.subr.bf16.mxu0 0
  %2241 = vmatpush1.bf16.msra.mxu0 %v2198
  %2242 = vmatprep.subr.bf16.mxu0 0
  %2243 = vmatpush1.bf16.msra.mxu0 %v2199
  %2244 = vmatprep.subr.bf16.mxu0 0
  %2245 = vmatpush1.bf16.msra.mxu0 %v2200
  %2246 = vmatprep.subr.bf16.mxu0 0
  %2247 = vmatpush1.bf16.msra.mxu0 %v2201
  %2248 = vmatprep.subr.bf16.mxu0 0
  %2249 = vmatpush1.bf16.msra.mxu0 0
  %2250 = vmatprep.subr.bf16.mxu0 0
  %2251 = vmatpush1.bf16.msra.mxu0 0
  %2252 = vmatprep.mubr.bf16.mxu0 %v2216
  %2253 = vmatmul.mubr.bf16.gmra.mrb[0].mxu0 %v2091
  %v2254 = vpop.f32.mrb[0].mxu0
  %v2255 = vadd.f32 0.0, %v2254
  %v2256 = vpop.f32.mrb[0].mxu0
  %v2257 = vpop.f32.mrb[0].mxu0
  %v2258 = vadd.f32 0.0, %v2257
  %v2259 = vpop.f32.mrb[0].mxu0
  %2260 = vmatprep.mubr.bf16.mxu0 %v2218
  %2261 = vmatmul.mubr.bf16.gmra.mrb[0].mxu0 %v2098
  %v2262 = vpop.f32.mrb[0].mxu0
  %v2263 = vadd.f32 0.0, %v2262
  %v2264 = vpop.f32.mrb[0].mxu0
  %v2265 = vpop.f32.mrb[0].mxu0
  %v2266 = vadd.f32 0.0, %v2265
  %v2267 = vpop.f32.mrb[0].mxu0
  %2268 = vdwg.mxu0
  %v2269 = vadd.f32 %v2075, %v2255
  %v2270 = vadd.f32 %v2076, %v2258
  %v2271 = vadd.f32 %v2077, %v2263
  %v2272 = vadd.f32 %v2078, %v2266
  %v2273 = vrot.slane %v1849, 1
  %v2274 = vrot.slane %v1851, 2
  %v2275 = vor.u32 %v2273, %v2274
  %v2276 = vrot.slane %v1855, 1
  %v2277 = vrot.slane %v1857, 2
  %v2278 = vor.u32 %v2276, %v2277
  %v2279 = vrot.slane %v1855, 5
  %v2280 = vrot.slane %v1857, 6
  %v2281 = vor.u32 %v2279, %v2280
  %v2282 = vrot.slane %v1865, 5
  %v2283 = vrot.slane %v1868, 6
  %v2284 = vor.u32 %v2282, %v2283
  %v2285 = vrot.slane %v1872, 1
  %v2286 = vrot.slane %v1874, 2
  %v2287 = vor.u32 %v2285, %v2286
  %v2288 = vrot.slane %v1878, 1
  %v2289 = vrot.slane %v1880, 2
  %v2290 = vor.u32 %v2288, %v2289
  %v2291 = vrot.slane %v1878, 5
  %v2292 = vrot.slane %v1880, 6
  %v2293 = vor.u32 %v2291, %v2292
  %v2294 = vrot.slane %v1888, 5
  %v2295 = vrot.slane %v1891, 6
  %v2296 = vor.u32 %v2294, %v2295
  %v2299 = vsel %vm256, %v2275, %v2281
  %v2303 = vsel %vm256, %v2278, %v2284
  %v2306 = vsel %vm256, %v2287, %v2293
  %v2310 = vsel %vm256, %v2290, %v2296
  %s2311 = scalar_lea.vmem %s1, 1120
  %v2312 = vld [vmem:[%s2311] sm:$0xf]
  %v2313 = vld [vmem:[%s2311 + $0x4] sm:$0xf]
  %v2314 = vld [vmem:[%s2311 + $0x8] sm:$0xf]
  %v2315 = vld [vmem:[%s2311 + $0xc] sm:$0xf]
  %v2316 = vld [vmem:[%s2311 + $0x10] sm:$0xf]
  %v2317 = vld [vmem:[%s2311 + $0x14] sm:$0xf]
  %v2318 = vld [vmem:[%s2311 + $0x18] sm:$0xf]
  %v2319 = vld [vmem:[%s2311 + $0x1c] sm:$0xf]
  %v2320 = vld [vmem:[%s2311 + $0x20] sm:$0xf]
  %v2321 = vld [vmem:[%s2311 + $0x24] sm:$0xf]
  %v2322 = vld [vmem:[%s2311 + $0x28] sm:$0xf]
  %v2323 = vld [vmem:[%s2311 + $0x2c] sm:$0xf]
  %v2324 = vld [vmem:[%s2311 + $0x30] sm:$0xf]
  %v2325 = vld [vmem:[%s2311 + $0x34] sm:$0xf]
  %v2326 = vld [vmem:[%s2311 + $0x38] sm:$0xf]
  %v2327 = vld [vmem:[%s2311 + $0x3c] sm:$0xf]
  %v2328 = vld [vmem:[%s2311 + $0x40] sm:$0xf]
  %v2329 = vld [vmem:[%s2311 + $0x44] sm:$0xf]
  %v2330 = vld [vmem:[%s2311 + $0x48] sm:$0xf]
  %v2331 = vld [vmem:[%s2311 + $0x4c] sm:$0xf]
  %v2332 = vld [vmem:[%s2311 + $0x50] sm:$0xf]
  %v2333 = vld [vmem:[%s2311 + $0x54] sm:$0xf]
  %v2334 = vld [vmem:[%s2311 + $0x58] sm:$0xf]
  %v2335 = vld [vmem:[%s2311 + $0x5c] sm:$0xf]
  %v2336 = vld [vmem:[%s2311 + $0x60] sm:$0xf]
  %v2337 = vld [vmem:[%s2311 + $0x64] sm:$0xf]
  %v2338 = vld [vmem:[%s2311 + $0x68] sm:$0xf]
  %v2339 = vld [vmem:[%s2311 + $0x6c] sm:$0xf]
  %v2368 = vunpack.c.l.b16 %v2312
  %v2369 = vunpack.c.l.b16 %v2313
  %v2370 = vunpack.c.l.b16 %v2314
  %v2371 = vunpack.c.l.b16 %v2315
  %v2372 = vunpack.c.l.b16 %v2316
  %v2373 = vunpack.c.l.b16 %v2317
  %v2374 = vunpack.c.l.b16 %v2318
  %v2375 = vunpack.c.l.b16 %v2319
  %v2376 = vunpack.c.l.b16 %v2320
  %v2377 = vunpack.c.l.b16 %v2321
  %v2378 = vunpack.c.l.b16 %v2322
  %v2379 = vunpack.c.l.b16 %v2323
  %v2380 = vunpack.c.l.b16 %v2324
  %v2381 = vunpack.c.l.b16 %v2325
  %v2382 = vunpack.c.l.b16 %v2326
  %v2383 = vunpack.c.l.b16 %v2327
  %v2384 = vunpack.c.l.b16 %v2328
  %v2385 = vunpack.c.l.b16 %v2329
  %v2386 = vunpack.c.l.b16 %v2330
  %v2387 = vunpack.c.l.b16 %v2331
  %v2388 = vunpack.c.l.b16 %v2332
  %v2389 = vunpack.c.l.b16 %v2333
  %v2390 = vunpack.c.l.b16 %v2334
  %v2391 = vunpack.c.l.b16 %v2335
  %v2392 = vunpack.c.l.b16 %v2336
  %v2393 = vunpack.c.l.b16 %v2337
  %v2394 = vunpack.c.l.b16 %v2338
  %v2395 = vunpack.c.l.b16 %v2339
  %v2396 = vpack.c.b16 %v2369, %v2368
  %v2397 = vpack.c.b16 %v2371, %v2370
  %v2398 = vpack.c.b16 %v2373, %v2372
  %v2399 = vpack.c.b16 %v2375, %v2374
  %v2400 = vpack.c.b16 %v2377, %v2376
  %v2401 = vpack.c.b16 %v2379, %v2378
  %v2402 = vpack.c.b16 %v2381, %v2380
  %v2403 = vpack.c.b16 %v2383, %v2382
  %v2404 = vpack.c.b16 %v2385, %v2384
  %v2405 = vpack.c.b16 %v2387, %v2386
  %v2406 = vpack.c.b16 %v2389, %v2388
  %v2407 = vpack.c.b16 %v2391, %v2390
  %v2408 = vpack.c.b16 %v2393, %v2392
  %v2409 = vpack.c.b16 %v2395, %v2394
  %v2424 = vsel %vm472, %v2303, 0
  %v2426 = vsel %vm472, %v2310, 0
  %2428 = vmatprep.subr.bf16.mxu0 0
  %2429 = vmatpush1.bf16.msra.mxu0 %v2396
  %2430 = vmatprep.subr.bf16.mxu0 0
  %2431 = vmatpush1.bf16.msra.mxu0 %v2397
  %2432 = vmatprep.subr.bf16.mxu0 0
  %2433 = vmatpush1.bf16.msra.mxu0 %v2398
  %2434 = vmatprep.subr.bf16.mxu0 0
  %2435 = vmatpush1.bf16.msra.mxu0 %v2399
  %2436 = vmatprep.subr.bf16.mxu0 0
  %2437 = vmatpush1.bf16.msra.mxu0 %v2400
  %2438 = vmatprep.subr.bf16.mxu0 0
  %2439 = vmatpush1.bf16.msra.mxu0 %v2401
  %2440 = vmatprep.subr.bf16.mxu0 0
  %2441 = vmatpush1.bf16.msra.mxu0 %v2402
  %2442 = vmatprep.subr.bf16.mxu0 0
  %2443 = vmatpush1.bf16.msra.mxu0 %v2403
  %2444 = vmatprep.subr.bf16.mxu0 0
  %2445 = vmatpush1.bf16.msra.mxu0 %v2404
  %2446 = vmatprep.subr.bf16.mxu0 0
  %2447 = vmatpush1.bf16.msra.mxu0 %v2405
  %2448 = vmatprep.subr.bf16.mxu0 0
  %2449 = vmatpush1.bf16.msra.mxu0 %v2406
  %2450 = vmatprep.subr.bf16.mxu0 0
  %2451 = vmatpush1.bf16.msra.mxu0 %v2407
  %2452 = vmatprep.subr.bf16.mxu0 0
  %2453 = vmatpush1.bf16.msra.mxu0 %v2408
  %2454 = vmatprep.subr.bf16.mxu0 0
  %2455 = vmatpush1.bf16.msra.mxu0 %v2409
  %2456 = vmatprep.subr.bf16.mxu0 0
  %2457 = vmatpush1.bf16.msra.mxu0 0
  %2458 = vmatprep.subr.bf16.mxu0 0
  %2459 = vmatpush1.bf16.msra.mxu0 0
  %2460 = vmatprep.mubr.bf16.mxu0 %v2424
  %2461 = vmatmul.mubr.bf16.gmra.mrb[0].mxu0 %v2299
  %v2462 = vpop.f32.mrb[0].mxu0
  %v2463 = vadd.f32 0.0, %v2462
  %v2464 = vpop.f32.mrb[0].mxu0
  %v2465 = vpop.f32.mrb[0].mxu0
  %v2466 = vadd.f32 0.0, %v2465
  %v2467 = vpop.f32.mrb[0].mxu0
  %2468 = vmatprep.mubr.bf16.mxu0 %v2426
  %2469 = vmatmul.mubr.bf16.gmra.mrb[0].mxu0 %v2306
  %v2470 = vpop.f32.mrb[0].mxu0
  %v2471 = vadd.f32 0.0, %v2470
  %v2472 = vpop.f32.mrb[0].mxu0
  %v2473 = vpop.f32.mrb[0].mxu0
  %v2474 = vadd.f32 0.0, %v2473
  %v2475 = vpop.f32.mrb[0].mxu0
  %2476 = vdwg.mxu0
  %v2477 = vadd.f32 %v2269, %v2463
  %v2478 = vadd.f32 %v2270, %v2466
  %v2479 = vadd.f32 %v2271, %v2471
  %v2480 = vadd.f32 %v2272, %v2474
  %v2481 = vrot.slane %v131, 2
  %v2482 = vrot.slane %v132, 2
  %v2483 = vrot.slane %v132, 6
  %v2484 = vrot.slane %v133, 6
  %v2485 = vrot.slane %v245, 2
  %v2486 = vrot.slane %v246, 2
  %v2487 = vrot.slane %v246, 6
  %v2488 = vrot.slane %v247, 6
  %v2491 = vsel %vm256, %v2481, %v2483
  %v2495 = vsel %vm256, %v2482, %v2484
  %v2498 = vsel %vm256, %v2485, %v2487
  %v2502 = vsel %vm256, %v2486, %v2488
  %s2503 = scalar_lea.vmem %s1, 1232
  %v2504 = vld [vmem:[%s2503] sm:$0xf]
  %v2505 = vld [vmem:[%s2503 + $0x4] sm:$0xf]
  %v2506 = vld [vmem:[%s2503 + $0x8] sm:$0xf]
  %v2507 = vld [vmem:[%s2503 + $0xc] sm:$0xf]
  %v2508 = vld [vmem:[%s2503 + $0x10] sm:$0xf]
  %v2509 = vld [vmem:[%s2503 + $0x14] sm:$0xf]
  %v2510 = vld [vmem:[%s2503 + $0x18] sm:$0xf]
  %v2511 = vld [vmem:[%s2503 + $0x1c] sm:$0xf]
  %v2512 = vld [vmem:[%s2503 + $0x20] sm:$0xf]
  %v2513 = vld [vmem:[%s2503 + $0x24] sm:$0xf]
  %v2514 = vld [vmem:[%s2503 + $0x28] sm:$0xf]
  %v2515 = vld [vmem:[%s2503 + $0x2c] sm:$0xf]
  %v2516 = vld [vmem:[%s2503 + $0x30] sm:$0xf]
  %v2517 = vld [vmem:[%s2503 + $0x34] sm:$0xf]
  %v2518 = vld [vmem:[%s2503 + $0x38] sm:$0xf]
  %v2519 = vld [vmem:[%s2503 + $0x3c] sm:$0xf]
  %v2520 = vld [vmem:[%s2503 + $0x40] sm:$0xf]
  %v2521 = vld [vmem:[%s2503 + $0x44] sm:$0xf]
  %v2522 = vld [vmem:[%s2503 + $0x48] sm:$0xf]
  %v2523 = vld [vmem:[%s2503 + $0x4c] sm:$0xf]
  %v2524 = vld [vmem:[%s2503 + $0x50] sm:$0xf]
  %v2525 = vld [vmem:[%s2503 + $0x54] sm:$0xf]
  %v2526 = vld [vmem:[%s2503 + $0x58] sm:$0xf]
  %v2527 = vld [vmem:[%s2503 + $0x5c] sm:$0xf]
  %v2528 = vld [vmem:[%s2503 + $0x60] sm:$0xf]
  %v2529 = vld [vmem:[%s2503 + $0x64] sm:$0xf]
  %v2530 = vld [vmem:[%s2503 + $0x68] sm:$0xf]
  %v2531 = vld [vmem:[%s2503 + $0x6c] sm:$0xf]
  %v2560 = vunpack.c.l.b16 %v2504
  %v2561 = vunpack.c.l.b16 %v2505
  %v2562 = vunpack.c.l.b16 %v2506
  %v2563 = vunpack.c.l.b16 %v2507
  %v2564 = vunpack.c.l.b16 %v2508
  %v2565 = vunpack.c.l.b16 %v2509
  %v2566 = vunpack.c.l.b16 %v2510
  %v2567 = vunpack.c.l.b16 %v2511
  %v2568 = vunpack.c.l.b16 %v2512
  %v2569 = vunpack.c.l.b16 %v2513
  %v2570 = vunpack.c.l.b16 %v2514
  %v2571 = vunpack.c.l.b16 %v2515
  %v2572 = vunpack.c.l.b16 %v2516
  %v2573 = vunpack.c.l.b16 %v2517
  %v2574 = vunpack.c.l.b16 %v2518
  %v2575 = vunpack.c.l.b16 %v2519
  %v2576 = vunpack.c.l.b16 %v2520
  %v2577 = vunpack.c.l.b16 %v2521
  %v2578 = vunpack.c.l.b16 %v2522
  %v2579 = vunpack.c.l.b16 %v2523
  %v2580 = vunpack.c.l.b16 %v2524
  %v2581 = vunpack.c.l.b16 %v2525
  %v2582 = vunpack.c.l.b16 %v2526
  %v2583 = vunpack.c.l.b16 %v2527
  %v2584 = vunpack.c.l.b16 %v2528
  %v2585 = vunpack.c.l.b16 %v2529
  %v2586 = vunpack.c.l.b16 %v2530
  %v2587 = vunpack.c.l.b16 %v2531
  %v2588 = vpack.c.b16 %v2561, %v2560
  %v2589 = vpack.c.b16 %v2563, %v2562
  %v2590 = vpack.c.b16 %v2565, %v2564
  %v2591 = vpack.c.b16 %v2567, %v2566
  %v2592 = vpack.c.b16 %v2569, %v2568
  %v2593 = vpack.c.b16 %v2571, %v2570
  %v2594 = vpack.c.b16 %v2573, %v2572
  %v2595 = vpack.c.b16 %v2575, %v2574
  %v2596 = vpack.c.b16 %v2577, %v2576
  %v2597 = vpack.c.b16 %v2579, %v2578
  %v2598 = vpack.c.b16 %v2581, %v2580
  %v2599 = vpack.c.b16 %v2583, %v2582
  %v2600 = vpack.c.b16 %v2585, %v2584
  %v2601 = vpack.c.b16 %v2587, %v2586
  %v2616 = vsel %vm472, %v2495, 0
  %v2618 = vsel %vm472, %v2502, 0
  %2620 = vmatprep.subr.bf16.mxu0 0
  %2621 = vmatpush1.bf16.msra.mxu0 %v2588
  %2622 = vmatprep.subr.bf16.mxu0 0
  %2623 = vmatpush1.bf16.msra.mxu0 %v2589
  %2624 = vmatprep.subr.bf16.mxu0 0
  %2625 = vmatpush1.bf16.msra.mxu0 %v2590
  %2626 = vmatprep.subr.bf16.mxu0 0
  %2627 = vmatpush1.bf16.msra.mxu0 %v2591
  %2628 = vmatprep.subr.bf16.mxu0 0
  %2629 = vmatpush1.bf16.msra.mxu0 %v2592
  %2630 = vmatprep.subr.bf16.mxu0 0
  %2631 = vmatpush1.bf16.msra.mxu0 %v2593
  %2632 = vmatprep.subr.bf16.mxu0 0
  %2633 = vmatpush1.bf16.msra.mxu0 %v2594
  %2634 = vmatprep.subr.bf16.mxu0 0
  %2635 = vmatpush1.bf16.msra.mxu0 %v2595
  %2636 = vmatprep.subr.bf16.mxu0 0
  %2637 = vmatpush1.bf16.msra.mxu0 %v2596
  %2638 = vmatprep.subr.bf16.mxu0 0
  %2639 = vmatpush1.bf16.msra.mxu0 %v2597
  %2640 = vmatprep.subr.bf16.mxu0 0
  %2641 = vmatpush1.bf16.msra.mxu0 %v2598
  %2642 = vmatprep.subr.bf16.mxu0 0
  %2643 = vmatpush1.bf16.msra.mxu0 %v2599
  %2644 = vmatprep.subr.bf16.mxu0 0
  %2645 = vmatpush1.bf16.msra.mxu0 %v2600
  %2646 = vmatprep.subr.bf16.mxu0 0
  %2647 = vmatpush1.bf16.msra.mxu0 %v2601
  %2648 = vmatprep.subr.bf16.mxu0 0
  %2649 = vmatpush1.bf16.msra.mxu0 0
  %2650 = vmatprep.subr.bf16.mxu0 0
  %2651 = vmatpush1.bf16.msra.mxu0 0
  %2652 = vmatprep.mubr.bf16.mxu0 %v2616
  %2653 = vmatmul.mubr.bf16.gmra.mrb[0].mxu0 %v2491
  %v2654 = vpop.f32.mrb[0].mxu0
  %v2655 = vadd.f32 0.0, %v2654
  %v2656 = vpop.f32.mrb[0].mxu0
  %v2657 = vpop.f32.mrb[0].mxu0
  %v2658 = vadd.f32 0.0, %v2657
  %v2659 = vpop.f32.mrb[0].mxu0
  %2660 = vmatprep.mubr.bf16.mxu0 %v2618
  %2661 = vmatmul.mubr.bf16.gmra.mrb[0].mxu0 %v2498
  %v2662 = vpop.f32.mrb[0].mxu0
  %v2663 = vadd.f32 0.0, %v2662
  %v2664 = vpop.f32.mrb[0].mxu0
  %v2665 = vpop.f32.mrb[0].mxu0
  %v2666 = vadd.f32 0.0, %v2665
  %v2667 = vpop.f32.mrb[0].mxu0
  %2668 = vdwg.mxu0
  %v2669 = vadd.f32 %v2477, %v2655
  %v2670 = vadd.f32 %v2478, %v2658
  %v2671 = vadd.f32 %v2479, %v2663
  %v2672 = vadd.f32 %v2480, %v2666
  %v2673 = vrot.slane %v1849, 2
  %v2674 = vrot.slane %v1851, 3
  %v2675 = vor.u32 %v2673, %v2674
  %v2676 = vrot.slane %v1855, 2
  %v2677 = vrot.slane %v1857, 3
  %v2678 = vor.u32 %v2676, %v2677
  %v2679 = vrot.slane %v1855, 6
  %v2680 = vrot.slane %v1857, 7
  %v2681 = vor.u32 %v2679, %v2680
  %v2682 = vrot.slane %v1865, 6
  %v2683 = vrot.slane %v1868, 7
  %v2684 = vor.u32 %v2682, %v2683
  %v2685 = vrot.slane %v1872, 2
  %v2686 = vrot.slane %v1874, 3
  %v2687 = vor.u32 %v2685, %v2686
  %v2688 = vrot.slane %v1878, 2
  %v2689 = vrot.slane %v1880, 3
  %v2690 = vor.u32 %v2688, %v2689
  %v2691 = vrot.slane %v1878, 6
  %v2692 = vrot.slane %v1880, 7
  %v2693 = vor.u32 %v2691, %v2692
  %v2694 = vrot.slane %v1888, 6
  %v2695 = vrot.slane %v1891, 7
  %v2696 = vor.u32 %v2694, %v2695
  %v2699 = vsel %vm256, %v2675, %v2681
  %v2703 = vsel %vm256, %v2678, %v2684
  %v2706 = vsel %vm256, %v2687, %v2693
  %v2710 = vsel %vm256, %v2690, %v2696
  %s2711 = scalar_lea.vmem %s1, 1344
  %v2712 = vld [vmem:[%s2711] sm:$0xf]
  %v2713 = vld [vmem:[%s2711 + $0x4] sm:$0xf]
  %v2714 = vld [vmem:[%s2711 + $0x8] sm:$0xf]
  %v2715 = vld [vmem:[%s2711 + $0xc] sm:$0xf]
  %v2716 = vld [vmem:[%s2711 + $0x10] sm:$0xf]
  %v2717 = vld [vmem:[%s2711 + $0x14] sm:$0xf]
  %v2718 = vld [vmem:[%s2711 + $0x18] sm:$0xf]
  %v2719 = vld [vmem:[%s2711 + $0x1c] sm:$0xf]
  %v2720 = vld [vmem:[%s2711 + $0x20] sm:$0xf]
  %v2721 = vld [vmem:[%s2711 + $0x24] sm:$0xf]
  %v2722 = vld [vmem:[%s2711 + $0x28] sm:$0xf]
  %v2723 = vld [vmem:[%s2711 + $0x2c] sm:$0xf]
  %v2724 = vld [vmem:[%s2711 + $0x30] sm:$0xf]
  %v2725 = vld [vmem:[%s2711 + $0x34] sm:$0xf]
  %v2726 = vld [vmem:[%s2711 + $0x38] sm:$0xf]
  %v2727 = vld [vmem:[%s2711 + $0x3c] sm:$0xf]
  %v2728 = vld [vmem:[%s2711 + $0x40] sm:$0xf]
  %v2729 = vld [vmem:[%s2711 + $0x44] sm:$0xf]
  %v2730 = vld [vmem:[%s2711 + $0x48] sm:$0xf]
  %v2731 = vld [vmem:[%s2711 + $0x4c] sm:$0xf]
  %v2732 = vld [vmem:[%s2711 + $0x50] sm:$0xf]
  %v2733 = vld [vmem:[%s2711 + $0x54] sm:$0xf]
  %v2734 = vld [vmem:[%s2711 + $0x58] sm:$0xf]
  %v2735 = vld [vmem:[%s2711 + $0x5c] sm:$0xf]
  %v2736 = vld [vmem:[%s2711 + $0x60] sm:$0xf]
  %v2737 = vld [vmem:[%s2711 + $0x64] sm:$0xf]
  %v2738 = vld [vmem:[%s2711 + $0x68] sm:$0xf]
  %v2739 = vld [vmem:[%s2711 + $0x6c] sm:$0xf]
  %v2768 = vunpack.c.l.b16 %v2712
  %v2769 = vunpack.c.l.b16 %v2713
  %v2770 = vunpack.c.l.b16 %v2714
  %v2771 = vunpack.c.l.b16 %v2715
  %v2772 = vunpack.c.l.b16 %v2716
  %v2773 = vunpack.c.l.b16 %v2717
  %v2774 = vunpack.c.l.b16 %v2718
  %v2775 = vunpack.c.l.b16 %v2719
  %v2776 = vunpack.c.l.b16 %v2720
  %v2777 = vunpack.c.l.b16 %v2721
  %v2778 = vunpack.c.l.b16 %v2722
  %v2779 = vunpack.c.l.b16 %v2723
  %v2780 = vunpack.c.l.b16 %v2724
  %v2781 = vunpack.c.l.b16 %v2725
  %v2782 = vunpack.c.l.b16 %v2726
  %v2783 = vunpack.c.l.b16 %v2727
  %v2784 = vunpack.c.l.b16 %v2728
  %v2785 = vunpack.c.l.b16 %v2729
  %v2786 = vunpack.c.l.b16 %v2730
  %v2787 = vunpack.c.l.b16 %v2731
  %v2788 = vunpack.c.l.b16 %v2732
  %v2789 = vunpack.c.l.b16 %v2733
  %v2790 = vunpack.c.l.b16 %v2734
  %v2791 = vunpack.c.l.b16 %v2735
  %v2792 = vunpack.c.l.b16 %v2736
  %v2793 = vunpack.c.l.b16 %v2737
  %v2794 = vunpack.c.l.b16 %v2738
  %v2795 = vunpack.c.l.b16 %v2739
  %v2796 = vpack.c.b16 %v2769, %v2768
  %v2797 = vpack.c.b16 %v2771, %v2770
  %v2798 = vpack.c.b16 %v2773, %v2772
  %v2799 = vpack.c.b16 %v2775, %v2774
  %v2800 = vpack.c.b16 %v2777, %v2776
  %v2801 = vpack.c.b16 %v2779, %v2778
  %v2802 = vpack.c.b16 %v2781, %v2780
  %v2803 = vpack.c.b16 %v2783, %v2782
  %v2804 = vpack.c.b16 %v2785, %v2784
  %v2805 = vpack.c.b16 %v2787, %v2786
  %v2806 = vpack.c.b16 %v2789, %v2788
  %v2807 = vpack.c.b16 %v2791, %v2790
  %v2808 = vpack.c.b16 %v2793, %v2792
  %v2809 = vpack.c.b16 %v2795, %v2794
  %v2824 = vsel %vm472, %v2703, 0
  %v2826 = vsel %vm472, %v2710, 0
  %2828 = vmatprep.subr.bf16.mxu0 0
  %2829 = vmatpush1.bf16.msra.mxu0 %v2796
  %2830 = vmatprep.subr.bf16.mxu0 0
  %2831 = vmatpush1.bf16.msra.mxu0 %v2797
  %2832 = vmatprep.subr.bf16.mxu0 0
  %2833 = vmatpush1.bf16.msra.mxu0 %v2798
  %2834 = vmatprep.subr.bf16.mxu0 0
  %2835 = vmatpush1.bf16.msra.mxu0 %v2799
  %2836 = vmatprep.subr.bf16.mxu0 0
  %2837 = vmatpush1.bf16.msra.mxu0 %v2800
  %2838 = vmatprep.subr.bf16.mxu0 0
  %2839 = vmatpush1.bf16.msra.mxu0 %v2801
  %2840 = vmatprep.subr.bf16.mxu0 0
  %2841 = vmatpush1.bf16.msra.mxu0 %v2802
  %2842 = vmatprep.subr.bf16.mxu0 0
  %2843 = vmatpush1.bf16.msra.mxu0 %v2803
  %2844 = vmatprep.subr.bf16.mxu0 0
  %2845 = vmatpush1.bf16.msra.mxu0 %v2804
  %2846 = vmatprep.subr.bf16.mxu0 0
  %2847 = vmatpush1.bf16.msra.mxu0 %v2805
  %2848 = vmatprep.subr.bf16.mxu0 0
  %2849 = vmatpush1.bf16.msra.mxu0 %v2806
  %2850 = vmatprep.subr.bf16.mxu0 0
  %2851 = vmatpush1.bf16.msra.mxu0 %v2807
  %2852 = vmatprep.subr.bf16.mxu0 0
  %2853 = vmatpush1.bf16.msra.mxu0 %v2808
  %2854 = vmatprep.subr.bf16.mxu0 0
  %2855 = vmatpush1.bf16.msra.mxu0 %v2809
  %2856 = vmatprep.subr.bf16.mxu0 0
  %2857 = vmatpush1.bf16.msra.mxu0 0
  %2858 = vmatprep.subr.bf16.mxu0 0
  %2859 = vmatpush1.bf16.msra.mxu0 0
  %2860 = vmatprep.mubr.bf16.mxu0 %v2824
  %2861 = vmatmul.mubr.bf16.gmra.mrb[0].mxu0 %v2699
  %v2862 = vpop.f32.mrb[0].mxu0
  %v2863 = vadd.f32 0.0, %v2862
  %v2864 = vpop.f32.mrb[0].mxu0
  %v2865 = vpop.f32.mrb[0].mxu0
  %v2866 = vadd.f32 0.0, %v2865
  %v2867 = vpop.f32.mrb[0].mxu0
  %2868 = vmatprep.mubr.bf16.mxu0 %v2826
  %2869 = vmatmul.mubr.bf16.gmra.mrb[0].mxu0 %v2706
  %v2870 = vpop.f32.mrb[0].mxu0
  %v2871 = vadd.f32 0.0, %v2870
  %v2872 = vpop.f32.mrb[0].mxu0
  %v2873 = vpop.f32.mrb[0].mxu0
  %v2874 = vadd.f32 0.0, %v2873
  %v2875 = vpop.f32.mrb[0].mxu0
  %2876 = vdwg.mxu0
  %v2877 = vadd.f32 %v2669, %v2863
  %v2878 = vadd.f32 %v2670, %v2866
  %v2879 = vadd.f32 %v2671, %v2871
  %v2880 = vadd.f32 %v2672, %v2874
  %v2881 = vrot.slane %v131, 3
  %v2882 = vrot.slane %v132, 3
  %v2883 = vrot.slane %v132, 7
  %v2884 = vrot.slane %v133, 7
  %v2885 = vrot.slane %v245, 3
  %v2886 = vrot.slane %v246, 3
  %v2887 = vrot.slane %v246, 7
  %v2888 = vrot.slane %v247, 7
  %v2891 = vsel %vm256, %v2881, %v2883
  %v2895 = vsel %vm256, %v2882, %v2884
  %v2898 = vsel %vm256, %v2885, %v2887
  %v2902 = vsel %vm256, %v2886, %v2888
  %s2903 = scalar_lea.vmem %s1, 1456
  %v2904 = vld [vmem:[%s2903] sm:$0xf]
  %v2905 = vld [vmem:[%s2903 + $0x4] sm:$0xf]
  %v2906 = vld [vmem:[%s2903 + $0x8] sm:$0xf]
  %v2907 = vld [vmem:[%s2903 + $0xc] sm:$0xf]
  %v2908 = vld [vmem:[%s2903 + $0x10] sm:$0xf]
  %v2909 = vld [vmem:[%s2903 + $0x14] sm:$0xf]
  %v2910 = vld [vmem:[%s2903 + $0x18] sm:$0xf]
  %v2911 = vld [vmem:[%s2903 + $0x1c] sm:$0xf]
  %v2912 = vld [vmem:[%s2903 + $0x20] sm:$0xf]
  %v2913 = vld [vmem:[%s2903 + $0x24] sm:$0xf]
  %v2914 = vld [vmem:[%s2903 + $0x28] sm:$0xf]
  %v2915 = vld [vmem:[%s2903 + $0x2c] sm:$0xf]
  %v2916 = vld [vmem:[%s2903 + $0x30] sm:$0xf]
  %v2917 = vld [vmem:[%s2903 + $0x34] sm:$0xf]
  %v2918 = vld [vmem:[%s2903 + $0x38] sm:$0xf]
  %v2919 = vld [vmem:[%s2903 + $0x3c] sm:$0xf]
  %v2920 = vld [vmem:[%s2903 + $0x40] sm:$0xf]
  %v2921 = vld [vmem:[%s2903 + $0x44] sm:$0xf]
  %v2922 = vld [vmem:[%s2903 + $0x48] sm:$0xf]
  %v2923 = vld [vmem:[%s2903 + $0x4c] sm:$0xf]
  %v2924 = vld [vmem:[%s2903 + $0x50] sm:$0xf]
  %v2925 = vld [vmem:[%s2903 + $0x54] sm:$0xf]
  %v2926 = vld [vmem:[%s2903 + $0x58] sm:$0xf]
  %v2927 = vld [vmem:[%s2903 + $0x5c] sm:$0xf]
  %v2928 = vld [vmem:[%s2903 + $0x60] sm:$0xf]
  %v2929 = vld [vmem:[%s2903 + $0x64] sm:$0xf]
  %v2930 = vld [vmem:[%s2903 + $0x68] sm:$0xf]
  %v2931 = vld [vmem:[%s2903 + $0x6c] sm:$0xf]
  %v2960 = vunpack.c.l.b16 %v2904
  %v2961 = vunpack.c.l.b16 %v2905
  %v2962 = vunpack.c.l.b16 %v2906
  %v2963 = vunpack.c.l.b16 %v2907
  %v2964 = vunpack.c.l.b16 %v2908
  %v2965 = vunpack.c.l.b16 %v2909
  %v2966 = vunpack.c.l.b16 %v2910
  %v2967 = vunpack.c.l.b16 %v2911
  %v2968 = vunpack.c.l.b16 %v2912
  %v2969 = vunpack.c.l.b16 %v2913
  %v2970 = vunpack.c.l.b16 %v2914
  %v2971 = vunpack.c.l.b16 %v2915
  %v2972 = vunpack.c.l.b16 %v2916
  %v2973 = vunpack.c.l.b16 %v2917
  %v2974 = vunpack.c.l.b16 %v2918
  %v2975 = vunpack.c.l.b16 %v2919
  %v2976 = vunpack.c.l.b16 %v2920
  %v2977 = vunpack.c.l.b16 %v2921
  %v2978 = vunpack.c.l.b16 %v2922
  %v2979 = vunpack.c.l.b16 %v2923
  %v2980 = vunpack.c.l.b16 %v2924
  %v2981 = vunpack.c.l.b16 %v2925
  %v2982 = vunpack.c.l.b16 %v2926
  %v2983 = vunpack.c.l.b16 %v2927
  %v2984 = vunpack.c.l.b16 %v2928
  %v2985 = vunpack.c.l.b16 %v2929
  %v2986 = vunpack.c.l.b16 %v2930
  %v2987 = vunpack.c.l.b16 %v2931
  %v2988 = vpack.c.b16 %v2961, %v2960
  %v2989 = vpack.c.b16 %v2963, %v2962
  %v2990 = vpack.c.b16 %v2965, %v2964
  %v2991 = vpack.c.b16 %v2967, %v2966
  %v2992 = vpack.c.b16 %v2969, %v2968
  %v2993 = vpack.c.b16 %v2971, %v2970
  %v2994 = vpack.c.b16 %v2973, %v2972
  %v2995 = vpack.c.b16 %v2975, %v2974
  %v2996 = vpack.c.b16 %v2977, %v2976
  %v2997 = vpack.c.b16 %v2979, %v2978
  %v2998 = vpack.c.b16 %v2981, %v2980
  %v2999 = vpack.c.b16 %v2983, %v2982
  %v3000 = vpack.c.b16 %v2985, %v2984
  %v3001 = vpack.c.b16 %v2987, %v2986
  %v3016 = vsel %vm472, %v2895, 0
  %v3018 = vsel %vm472, %v2902, 0
  %3020 = vmatprep.subr.bf16.mxu0 0
  %3021 = vmatpush1.bf16.msra.mxu0 %v2988
  %3022 = vmatprep.subr.bf16.mxu0 0
  %3023 = vmatpush1.bf16.msra.mxu0 %v2989
  %3024 = vmatprep.subr.bf16.mxu0 0
  %3025 = vmatpush1.bf16.msra.mxu0 %v2990
  %3026 = vmatprep.subr.bf16.mxu0 0
  %3027 = vmatpush1.bf16.msra.mxu0 %v2991
  %3028 = vmatprep.subr.bf16.mxu0 0
  %3029 = vmatpush1.bf16.msra.mxu0 %v2992
  %3030 = vmatprep.subr.bf16.mxu0 0
  %3031 = vmatpush1.bf16.msra.mxu0 %v2993
  %3032 = vmatprep.subr.bf16.mxu0 0
  %3033 = vmatpush1.bf16.msra.mxu0 %v2994
  %3034 = vmatprep.subr.bf16.mxu0 0
  %3035 = vmatpush1.bf16.msra.mxu0 %v2995
  %3036 = vmatprep.subr.bf16.mxu0 0
  %3037 = vmatpush1.bf16.msra.mxu0 %v2996
  %3038 = vmatprep.subr.bf16.mxu0 0
  %3039 = vmatpush1.bf16.msra.mxu0 %v2997
  %3040 = vmatprep.subr.bf16.mxu0 0
  %3041 = vmatpush1.bf16.msra.mxu0 %v2998
  %3042 = vmatprep.subr.bf16.mxu0 0
  %3043 = vmatpush1.bf16.msra.mxu0 %v2999
  %3044 = vmatprep.subr.bf16.mxu0 0
  %3045 = vmatpush1.bf16.msra.mxu0 %v3000
  %3046 = vmatprep.subr.bf16.mxu0 0
  %3047 = vmatpush1.bf16.msra.mxu0 %v3001
  %3048 = vmatprep.subr.bf16.mxu0 0
  %3049 = vmatpush1.bf16.msra.mxu0 0
  %3050 = vmatprep.subr.bf16.mxu0 0
  %3051 = vmatpush1.bf16.msra.mxu0 0
  %3052 = vmatprep.mubr.bf16.mxu0 %v3016
  %3053 = vmatmul.mubr.bf16.gmra.mrb[0].mxu0 %v2891
  %v3054 = vpop.f32.mrb[0].mxu0
  %v3055 = vadd.f32 0.0, %v3054
  %v3056 = vpop.f32.mrb[0].mxu0
  %v3057 = vpop.f32.mrb[0].mxu0
  %v3058 = vadd.f32 0.0, %v3057
  %v3059 = vpop.f32.mrb[0].mxu0
  %3060 = vmatprep.mubr.bf16.mxu0 %v3018
  %3061 = vmatmul.mubr.bf16.gmra.mrb[0].mxu0 %v2898
  %v3062 = vpop.f32.mrb[0].mxu0
  %v3063 = vadd.f32 0.0, %v3062
  %v3064 = vpop.f32.mrb[0].mxu0
  %v3065 = vpop.f32.mrb[0].mxu0
  %v3066 = vadd.f32 0.0, %v3065
  %v3067 = vpop.f32.mrb[0].mxu0
  %3068 = vdwg.mxu0
  %v3069 = vadd.f32 %v2877, %v3055
  %v3070 = vadd.f32 %v2878, %v3058
  %v3071 = vadd.f32 %v2879, %v3063
  %v3072 = vadd.f32 %v2880, %v3066
  %v3073 = vmul.f32 %v3069, 0.5
  %v3074 = vtanh.pop %v3073
  %v3075 = vmul.f32 %v3074, 0.5
  %v3076 = vadd.f32 %v3075, 0.5
  %v3077 = vld [vmem:[%s0] sm:$0xff]
  %v3078 = vld [vmem:[%s0 + $0x10] sm:$0xff]
  %v3079 = vld [vmem:[%s0 + $0x20] sm:$0xff]
  %v3080 = vld [vmem:[%s0 + $0x30] sm:$0xff]
  %v3081 = vmul.f32 %v3077, %v3076
  %v3082 = vmul.f32 %v3078, %v3076
  %v3083 = vmul.f32 %v3079, %v3076
  %v3084 = vmul.f32 %v3080, %v3076
  %3085 = vst [vmem:[%s2] sm:$0xff] %v3081
  %3086 = vst [vmem:[%s2 + $0x10] sm:$0xff] %v3082
  %3087 = vst [vmem:[%s2 + $0x20] sm:$0xff] %v3083
  %3088 = vst [vmem:[%s2 + $0x30] sm:$0xff] %v3084
  %v3089 = vmul.f32 %v3070, 0.5
  %v3090 = vtanh.pop %v3089
  %v3091 = vmul.f32 %v3090, 0.5
  %v3092 = vadd.f32 %v3091, 0.5
  %v3093 = vld [vmem:[%s0 + $0x8] sm:$0xff]
  %v3094 = vld [vmem:[%s0 + $0x18] sm:$0xff]
  %v3095 = vld [vmem:[%s0 + $0x28] sm:$0xff]
  %v3096 = vld [vmem:[%s0 + $0x38] sm:$0xff]
  %v3097 = vmul.f32 %v3093, %v3092
  %v3098 = vmul.f32 %v3094, %v3092
  %v3099 = vmul.f32 %v3095, %v3092
  %v3100 = vmul.f32 %v3096, %v3092
  %3101 = vst [vmem:[%s2 + $0x8] sm:$0xff] %v3097
  %3102 = vst [vmem:[%s2 + $0x18] sm:$0xff] %v3098
  %3103 = vst [vmem:[%s2 + $0x28] sm:$0xff] %v3099
  %3104 = vst [vmem:[%s2 + $0x38] sm:$0xff] %v3100
  %v3105 = vmul.f32 %v3071, 0.5
  %v3106 = vtanh.pop %v3105
  %v3107 = vmul.f32 %v3106, 0.5
  %v3108 = vadd.f32 %v3107, 0.5
  %v3109 = vld [vmem:[%s134] sm:$0xff]
  %v3110 = vld [vmem:[%s134 + $0x10] sm:$0xff]
  %v3111 = vld [vmem:[%s134 + $0x20] sm:$0xff]
  %v3112 = vld [vmem:[%s134 + $0x30] sm:$0xff]
  %v3113 = vmul.f32 %v3109, %v3108
  %v3114 = vmul.f32 %v3110, %v3108
  %v3115 = vmul.f32 %v3111, %v3108
  %v3116 = vmul.f32 %v3112, %v3108
  %s3117 = scalar_lea.vmem %s2, 64
  %3118 = vst [vmem:[%s3117] sm:$0xff] %v3113
  %3119 = vst [vmem:[%s3117 + $0x10] sm:$0xff] %v3114
  %3120 = vst [vmem:[%s3117 + $0x20] sm:$0xff] %v3115
  %3121 = vst [vmem:[%s3117 + $0x30] sm:$0xff] %v3116
  %v3122 = vmul.f32 %v3072, 0.5
  %v3123 = vtanh.pop %v3122
  %v3124 = vmul.f32 %v3123, 0.5
  %v3125 = vadd.f32 %v3124, 0.5
  %v3126 = vld [vmem:[%s134 + $0x8] sm:$0xff]
  %v3127 = vld [vmem:[%s134 + $0x18] sm:$0xff]
  %v3128 = vld [vmem:[%s134 + $0x28] sm:$0xff]
  %v3129 = vld [vmem:[%s134 + $0x38] sm:$0xff]
  %v3130 = vmul.f32 %v3126, %v3125
  %v3131 = vmul.f32 %v3127, %v3125
  %v3132 = vmul.f32 %v3128, %v3125
  %v3133 = vmul.f32 %v3129, %v3125
  %3134 = vst [vmem:[%s3117 + $0x8] sm:$0xff] %v3130
  %3135 = vst [vmem:[%s3117 + $0x18] sm:$0xff] %v3131
  %3136 = vst [vmem:[%s3117 + $0x28] sm:$0xff] %v3132
  %3137 = vst [vmem:[%s3117 + $0x38] sm:$0xff] %v3133
  // Predicated region
  $region10: #{spatial_attention.1} parent=0 // pred_check
    _
  $region11: #{spatial_attention.1} parent=0 // pred_check_branch
    %3139 = sbr.rel (0) target = $region13
  $region12: #{spatial_attention.1} parent=0 // pred_region
    _
  $region13: #{spatial_attention.1} parent=0 // pred_fallthru
    _
  // Predicated region
  $region14: #{spatial_attention.1} parent=0 // pred_check
    _
  $region15: #{spatial_attention.1} parent=0 // pred_check_branch
    %3141 = sbr.rel (0) target = $region17
  $region16: #{spatial_attention.1} parent=0 // pred_region
    _
  $region17: #{spatial_attention.1} parent=0 // pred_fallthru
    _

</llo_original>
